<compile_context>
chip_gen: v6e
topology: v6e:2x2x1
jax: 0.10.0
libtpu: 0.0.40
codegen_flags: <defaults>
</compile_context>

<pallas_src>
import jax
import jax.numpy as jnp
from jax.experimental import pallas as pl
from jax.experimental.pallas import tpu as pltpu


def pccn_kernel(x_ref, rel_ref,
                w_ref, b_ref,
                w1_ref, b1_ref, w2_ref, b2_ref, w3_ref, b3_ref,
                out_ref):
    x = x_ref[0]                      # (TN*K, I)
    rel = rel_ref[0]                  # (TN, K, D)
    TN, K, D = rel.shape

    # --- per-support-point max-norm normalization (guarded rsqrt, no divide) ---
    sq = jnp.sum(rel * rel, axis=-1)                           # (TN, K)
    max_sq = jnp.max(sq, axis=-1, keepdims=True)               # (TN, 1)
    inv = jnp.where(max_sq > 0.0, jax.lax.rsqrt(max_sq), 1.0)  # == 1/(sqrt+ (sqrt==0))
    reln = rel * inv[:, :, None]                               # (TN, K, D)

    # --- weight-generating MLP: D -> 16 -> 32 -> O ---
    # First layer: D (=3) is far too small for the MXU; do it as D VPU FMAs.
    h = reln[:, :, 0:1] * w1_ref[0:1, :] + b1_ref[...]         # (TN, K, 16)
    for d in range(1, D):
        h = h + reln[:, :, d:d + 1] * w1_ref[d:d + 1, :]
    h = jnp.maximum(h, 0.0)
    h = h.reshape(TN * K, h.shape[-1])                         # (TN*K, 16)

    h = jnp.dot(h, w2_ref[...], preferred_element_type=jnp.float32) + b2_ref[...]
    h = jnp.maximum(h, 0.0)                                    # (TN*K, 32)
    mat = jnp.dot(h, w3_ref[...], preferred_element_type=jnp.float32) + b3_ref[...]  # (TN*K, O)

    # --- feature projection + continuous-conv aggregation over the K neighbors ---
    fw = jnp.dot(x, w_ref[...], preferred_element_type=jnp.float32)                  # (TN*K, O)
    prod = (fw * mat).reshape(TN, K, -1)                       # (TN, K, O)
    out = jnp.sum(prod, axis=1) + b_ref[...]                   # (TN, O)

    # Store transposed so the N tile (>=128 at scale) sits in the lane dimension.
    out_ref[0] = out.T.astype(out_ref.dtype)                   # (O, TN)


def _round_up(x, m):
    return ((x + m - 1) // m) * m


def _choose_tile_n(N, K, I, D, O, budget_bytes=36 * 1024 * 1024):
    """Pick a support-point tile TN (and padded N) so the double-buffered blocks plus
    f32 temporaries fit a VMEM budget that is safe on v7x (64 MiB/TC) and v5e/v6e."""
    lane = lambda c: _round_up(max(int(c), 1), 128)     # lane (last-dim) padding in VMEM
    per_row = 4 * (                                     # f32 bytes per support point
        2 * K * lane(I)                                 # x block, double buffered
        + 2 * K * lane(D)                               # rel block, double buffered
        + 2 * _round_up(max(int(O), 1), 8)              # (O, TN) output block, double buffered
        + K * (lane(D) + lane(16) + lane(32) + 2 * lane(O))   # reln / h / fw / mat temps
    )
    cap = max(8, budget_bytes // per_row)
    if N <= cap:
        return N, N
    tn = max(128, (cap // 128) * 128)
    return tn, _round_up(N, tn)


def pccn_forward(input_feats, points, support_points, params):
    """input_feats: (B, I, N, K), points: (B, D, N, K), support_points: (B, D, N).
    Returns (features (B, O, N), support_points), matching PyTorch PCCN.forward."""
    B, I, N, K = input_feats.shape
    D = points.shape[1]
    O = params['weight'].shape[1]

    # Channels-last + flattened (N*K) rows, prepared once in the wrapper so the kernel's
    # matmuls see dense 2-D row blocks. The subtract fuses into the transpose pass.
    x = jnp.transpose(input_feats, (0, 2, 3, 1)).astype(jnp.float32)      # (B, N, K, I)
    rel = points - support_points[:, :, :, None]                           # (B, D, N, K)
    rel = jnp.transpose(rel, (0, 2, 3, 1)).astype(jnp.float32)             # (B, N, K, D)

    TN, Np = _choose_tile_n(N, K, I, D, O)
    if Np > N:
        # Zero padding is semantics-safe: padded rows give fw == 0 -> zero contribution,
        # and max_sq == 0 hits the same guard as the original code. Sliced off below.
        x = jnp.pad(x, ((0, 0), (0, Np - N), (0, 0), (0, 0)))
        rel = jnp.pad(rel, ((0, 0), (0, Np - N), (0, 0), (0, 0)))
    x_flat = x.reshape(B, Np * K, I)
    n_tiles = Np // TN

    def full_spec(shape):
        return pl.BlockSpec(shape, lambda b, n, _r=len(shape): (0,) * _r)

    grid_spec = pltpu.PrefetchScalarGridSpec(
        num_scalar_prefetch=0,
        grid=(B, n_tiles),
        in_specs=[
            pl.BlockSpec((1, TN * K, I), lambda b, n: (b, n, 0)),
            pl.BlockSpec((1, TN, K, D), lambda b, n: (b, n, 0, 0)),
            full_spec(params['weight'].shape),
            full_spec(params['bias'].shape),
            full_spec(params['w1'].shape),
            full_spec(params['b1'].shape),
            full_spec(params['w2'].shape),
            full_spec(params['b2'].shape),
            full_spec(params['w3'].shape),
            full_spec(params['b3'].shape),
        ],
        out_specs=pl.BlockSpec((1, O, TN), lambda b, n: (b, 0, n)),
    )

    param_bytes = 4 * sum(int(params[k].size) for k in
                          ('weight', 'bias', 'w1', 'b1', 'w2', 'b2', 'w3', 'b3'))
    cost = pl.CostEstimate(
        flops=2 * B * Np * K * (I * O + D * 16 + 16 * 32 + 32 * O) + 2 * B * Np * K * O,
        transcendentals=B * Np,
        bytes_accessed=4 * (int(x_flat.size) + int(rel.size) + B * O * Np) + param_bytes,
    )

    out = pl.pallas_call(
        pccn_kernel,
        out_shape=jax.ShapeDtypeStruct((B, O, Np), jnp.float32),
        grid_spec=grid_spec,
        compiler_params=pltpu.CompilerParams(
            dimension_semantics=("parallel", "parallel"),
            vmem_limit_bytes=48 * 1024 * 1024,
        ),
        cost_estimate=cost,
    )(x_flat, rel,
      params['weight'], params['bias'],
      params['w1'], params['b1'],
      params['w2'], params['b2'],
      params['w3'], params['b3'])

    features = out[:, :, :N] if Np > N else out                            # (B, O, N)
    return features, support_points


def init_params(key, in_channels, out_channels, dim=3):
    ks = jax.random.split(key, 8)

    def xavier(k, fan_in, fan_out, shape):
        bound = (6.0 / (fan_in + fan_out)) ** 0.5
        return jax.random.uniform(k, shape, jnp.float32, -bound, bound)

    return {
        'weight': xavier(ks[0], in_channels, out_channels, (in_channels, out_channels)),
        'bias': jnp.zeros((1, out_channels), jnp.float32),       # torch init: zeros
        'w1': xavier(ks[1], dim, 16, (dim, 16)),
        'b1': jax.random.uniform(ks[2], (1, 16), jnp.float32, -0.1, 0.1),
        'w2': xavier(ks[3], 16, 32, (16, 32)),
        'b2': jax.random.uniform(ks[4], (1, 32), jnp.float32, -0.1, 0.1),
        'w3': xavier(ks[5], 32, out_channels, (32, out_channels)),
        'b3': jax.random.uniform(ks[6], (1, out_channels), jnp.float32, -0.1, 0.1),
    }


def pccn_reference(input_feats, points, support_points, params):
    """Plain-JAX mirror of the PyTorch forward, for correctness checking."""
    rel = points - support_points[:, :, :, None]               # (B, D, N, K)
    sq = jnp.sum(rel ** 2, axis=1)                              # (B, N, K)
    maxi = jnp.sqrt(jnp.max(sq, axis=2))                        # (B, N)
    maxi = maxi + (maxi == 0.0).astype(maxi.dtype)
    reln = rel / maxi[:, None, :, None]
    p = jnp.transpose(reln, (0, 2, 3, 1))                       # (B, N, K, D)
    h = jax.nn.relu(p @ params['w1'] + params['b1'][0])
    h = jax.nn.relu(h @ params['w2'] + params['b2'][0])
    mat = h @ params['w3'] + params['b3'][0]                    # (B, N, K, O)
    fw = jnp.transpose(input_feats, (0, 2, 3, 1)) @ params['weight']   # (B, N, K, O)
    out = jnp.sum(fw * mat, axis=2) + params['bias'][0]         # (B, N, O)
    return jnp.transpose(out, (0, 2, 1))                        # (B, O, N)


if __name__ == "__main__":
    B, I, O, N, K, D = 2, 4, 8, 16, 8, 3

    key = jax.random.PRNGKey(0)
    k_in, k_pts, k_sup, k_par = jax.random.split(key, 4)

    input_feats = jax.random.normal(k_in, (B, I, N, K), jnp.float32)
    points = jax.random.normal(k_pts, (B, D, N, K), jnp.float32)
    support_points = jax.random.normal(k_sup, (B, D, N), jnp.float32)
    params = init_params(k_par, I, O, dim=D)

    feats, sup_out = pccn_forward(input_feats, points, support_points, params)
    feats = jax.block_until_ready(feats)

    ref = pccn_reference(input_feats, points, support_points, params)
    assert feats.shape == (B, O, N)
    assert jnp.allclose(feats, ref, rtol=1e-3, atol=1e-3), "mismatch vs reference"

    print("KERNEL_OK")
</pallas_src>

<mosaic_0001>
module attributes {stable_mosaic.version = 11 : i64} {
  func.func @pccn_kernel(%arg0: i32, %arg1: i32, %arg2: memref<1x128x4xf32, #tpu.memory_space<vmem>>, %arg3: memref<1x16x8x3xf32, #tpu.memory_space<vmem>>, %arg4: memref<4x8xf32, #tpu.memory_space<vmem>>, %arg5: memref<1x8xf32, #tpu.memory_space<vmem>>, %arg6: memref<3x16xf32, #tpu.memory_space<vmem>>, %arg7: memref<1x16xf32, #tpu.memory_space<vmem>>, %arg8: memref<16x32xf32, #tpu.memory_space<vmem>>, %arg9: memref<1x32xf32, #tpu.memory_space<vmem>>, %arg10: memref<32x8xf32, #tpu.memory_space<vmem>>, %arg11: memref<1x8xf32, #tpu.memory_space<vmem>>, %arg12: memref<1x8x16xf32, #tpu.memory_space<vmem>>) attributes {dimension_semantics = [#tpu.dimension_semantics<parallel>, #tpu.dimension_semantics<parallel>], iteration_bounds = array<i64: 2, 1>, scalar_prefetch = 0 : i64, scratch_operands = 0 : i64, tpu.core_type = #tpu.core_type<tc>, window_params = [{transform_indices = @transform_0, window_bounds = array<i64: 1, 128, 4>}, {transform_indices = @transform_1, window_bounds = array<i64: 1, 16, 8, 3>}, {pipeline_mode = #tpu.pipeline_mode<synchronous>, transform_indices = @transform_2, window_bounds = array<i64: 4, 8>}, {pipeline_mode = #tpu.pipeline_mode<synchronous>, transform_indices = @transform_3, window_bounds = array<i64: 1, 8>}, {pipeline_mode = #tpu.pipeline_mode<synchronous>, transform_indices = @transform_4, window_bounds = array<i64: 3, 16>}, {pipeline_mode = #tpu.pipeline_mode<synchronous>, transform_indices = @transform_5, window_bounds = array<i64: 1, 16>}, {pipeline_mode = #tpu.pipeline_mode<synchronous>, transform_indices = @transform_6, window_bounds = array<i64: 16, 32>}, {pipeline_mode = #tpu.pipeline_mode<synchronous>, transform_indices = @transform_7, window_bounds = array<i64: 1, 32>}, {pipeline_mode = #tpu.pipeline_mode<synchronous>, transform_indices = @transform_8, window_bounds = array<i64: 32, 8>}, {pipeline_mode = #tpu.pipeline_mode<synchronous>, transform_indices = @transform_9, window_bounds = array<i64: 1, 8>}, {transform_indices = @transform_10, window_bounds = array<i64: 1, 8, 16>}]} {
    %c0 = arith.constant 0 : index
    %c0_0 = arith.constant 0 : index
    %c0_1 = arith.constant 0 : index
    %0 = vector.load %arg2[%c0, %c0_0, %c0_1] : memref<1x128x4xf32, #tpu.memory_space<vmem>>, vector<1x128x4xf32>
    %1 = vector.shape_cast %0 : vector<1x128x4xf32> to vector<128x4xf32>
    %c0_2 = arith.constant 0 : index
    %c0_3 = arith.constant 0 : index
    %c0_4 = arith.constant 0 : index
    %c0_5 = arith.constant 0 : index
    %2 = vector.load %arg3[%c0_2, %c0_3, %c0_4, %c0_5] : memref<1x16x8x3xf32, #tpu.memory_space<vmem>>, vector<1x16x8x3xf32>
    %3 = vector.shape_cast %2 : vector<1x16x8x3xf32> to vector<16x8x3xf32>
    %4 = arith.mulf %3, %3 : vector<16x8x3xf32>
    %cst = arith.constant dense<0.000000e+00> : vector<16x8xf32>
    %5 = vector.multi_reduction <add>, %4, %cst [2] : vector<16x8x3xf32> to vector<16x8xf32>
    %cst_6 = arith.constant dense<0xFF800000> : vector<16xf32>
    %6 = vector.multi_reduction <maximumf>, %5, %cst_6 [1] : vector<16x8xf32> to vector<16xf32>
    %7 = vector.shape_cast %6 : vector<16xf32> to vector<16x1xf32>
    %cst_7 = arith.constant 0.000000e+00 : f32
    %8 = vector.broadcast %cst_7 : f32 to vector<16x1xf32>
    %9 = arith.cmpf ogt, %7, %8 : vector<16x1xf32>
    %10 = math.rsqrt %7 : vector<16x1xf32>
    %cst_8 = arith.constant 1.000000e+00 : f32
    %11 = vector.broadcast %cst_8 : f32 to vector<16x1xf32>
    %12 = arith.select %9, %10, %11 : vector<16x1xi1>, vector<16x1xf32>
    %13 = vector.shape_cast %12 : vector<16x1xf32> to vector<16x1x1xf32>
    %14 = vector.broadcast %13 : vector<16x1x1xf32> to vector<16x8x3xf32>
    %15 = arith.mulf %3, %14 : vector<16x8x3xf32>
    %16 = vector.extract_strided_slice %15 {offsets = [0, 0, 0], sizes = [16, 8, 1], strides = [1, 1, 1]} : vector<16x8x3xf32> to vector<16x8x1xf32>
    %c0_9 = arith.constant 0 : index
    %c0_10 = arith.constant 0 : index
    %17 = vector.load %arg6[%c0_9, %c0_10] : memref<3x16xf32, #tpu.memory_space<vmem>>, vector<1x16xf32>
    %18 = vector.shape_cast %17 : vector<1x16xf32> to vector<1x1x16xf32>
    %19 = vector.broadcast %16 : vector<16x8x1xf32> to vector<16x8x16xf32>
    %20 = vector.broadcast %18 : vector<1x1x16xf32> to vector<16x8x16xf32>
    %21 = arith.mulf %19, %20 : vector<16x8x16xf32>
    %c0_11 = arith.constant 0 : index
    %c0_12 = arith.constant 0 : index
    %22 = vector.load %arg7[%c0_11, %c0_12] : memref<1x16xf32, #tpu.memory_space<vmem>>, vector<1x16xf32>
    %23 = vector.shape_cast %22 : vector<1x16xf32> to vector<1x1x16xf32>
    %24 = vector.broadcast %23 : vector<1x1x16xf32> to vector<16x8x16xf32>
    %25 = arith.addf %21, %24 : vector<16x8x16xf32>
    %26 = vector.extract_strided_slice %15 {offsets = [0, 0, 1], sizes = [16, 8, 1], strides = [1, 1, 1]} : vector<16x8x3xf32> to vector<16x8x1xf32>
    %c1 = arith.constant 1 : index
    %c0_13 = arith.constant 0 : index
    %27 = vector.load %arg6[%c1, %c0_13] : memref<3x16xf32, #tpu.memory_space<vmem>>, vector<1x16xf32>
    %28 = vector.shape_cast %27 : vector<1x16xf32> to vector<1x1x16xf32>
    %29 = vector.broadcast %26 : vector<16x8x1xf32> to vector<16x8x16xf32>
    %30 = vector.broadcast %28 : vector<1x1x16xf32> to vector<16x8x16xf32>
    %31 = arith.mulf %29, %30 : vector<16x8x16xf32>
    %32 = arith.addf %25, %31 : vector<16x8x16xf32>
    %33 = vector.extract_strided_slice %15 {offsets = [0, 0, 2], sizes = [16, 8, 1], strides = [1, 1, 1]} : vector<16x8x3xf32> to vector<16x8x1xf32>
    %c2 = arith.constant 2 : index
    %c0_14 = arith.constant 0 : index
    %34 = vector.load %arg6[%c2, %c0_14] : memref<3x16xf32, #tpu.memory_space<vmem>>, vector<1x16xf32>
    %35 = vector.shape_cast %34 : vector<1x16xf32> to vector<1x1x16xf32>
    %36 = vector.broadcast %33 : vector<16x8x1xf32> to vector<16x8x16xf32>
    %37 = vector.broadcast %35 : vector<1x1x16xf32> to vector<16x8x16xf32>
    %38 = arith.mulf %36, %37 : vector<16x8x16xf32>
    %39 = arith.addf %32, %38 : vector<16x8x16xf32>
    %cst_15 = arith.constant 0.000000e+00 : f32
    %40 = vector.broadcast %cst_15 : f32 to vector<16x8x16xf32>
    %41 = arith.maximumf %39, %40 : vector<16x8x16xf32>
    %42 = vector.shape_cast %41 : vector<16x8x16xf32> to vector<128x16xf32>
    %c0_16 = arith.constant 0 : index
    %c0_17 = arith.constant 0 : index
    %43 = vector.load %arg8[%c0_16, %c0_17] : memref<16x32xf32, #tpu.memory_space<vmem>>, vector<16x32xf32>
    %cst_18 = arith.constant dense<0.000000e+00> : vector<128x32xf32>
    %44 = tpu.matmul %42, %43, %cst_18 {dimension_numbers = #tpu.dot_dimension_numbers<[1], [0], [0], [1], [0, 0, 1, 1], [], []>} : vector<128x16xf32>, vector<16x32xf32>, vector<128x32xf32> -> vector<128x32xf32>
    %c0_19 = arith.constant 0 : index
    %c0_20 = arith.constant 0 : index
    %45 = vector.load %arg9[%c0_19, %c0_20] : memref<1x32xf32, #tpu.memory_space<vmem>>, vector<1x32xf32>
    %46 = vector.broadcast %45 : vector<1x32xf32> to vector<128x32xf32>
    %47 = arith.addf %44, %46 : vector<128x32xf32>
    %cst_21 = arith.constant 0.000000e+00 : f32
    %48 = vector.broadcast %cst_21 : f32 to vector<128x32xf32>
    %49 = arith.maximumf %47, %48 : vector<128x32xf32>
    %c0_22 = arith.constant 0 : index
    %c0_23 = arith.constant 0 : index
    %50 = vector.load %arg10[%c0_22, %c0_23] : memref<32x8xf32, #tpu.memory_space<vmem>>, vector<32x8xf32>
    %cst_24 = arith.constant dense<0.000000e+00> : vector<128x8xf32>
    %51 = tpu.matmul %49, %50, %cst_24 {dimension_numbers = #tpu.dot_dimension_numbers<[1], [0], [0], [1], [0, 0, 1, 1], [], []>} : vector<128x32xf32>, vector<32x8xf32>, vector<128x8xf32> -> vector<128x8xf32>
    %c0_25 = arith.constant 0 : index
    %c0_26 = arith.constant 0 : index
    %52 = vector.load %arg11[%c0_25, %c0_26] : memref<1x8xf32, #tpu.memory_space<vmem>>, vector<1x8xf32>
    %53 = vector.broadcast %52 : vector<1x8xf32> to vector<128x8xf32>
    %54 = arith.addf %51, %53 : vector<128x8xf32>
    %c0_27 = arith.constant 0 : index
    %c0_28 = arith.constant 0 : index
    %55 = vector.load %arg4[%c0_27, %c0_28] : memref<4x8xf32, #tpu.memory_space<vmem>>, vector<4x8xf32>
    %cst_29 = arith.constant dense<0.000000e+00> : vector<128x8xf32>
    %56 = tpu.matmul %1, %55, %cst_29 {dimension_numbers = #tpu.dot_dimension_numbers<[1], [0], [0], [1], [0, 0, 1, 1], [], []>} : vector<128x4xf32>, vector<4x8xf32>, vector<128x8xf32> -> vector<128x8xf32>
    %57 = arith.mulf %56, %54 : vector<128x8xf32>
    %58 = vector.shape_cast %57 : vector<128x8xf32> to vector<16x8x8xf32>
    %cst_30 = arith.constant dense<0.000000e+00> : vector<16x8xf32>
    %59 = vector.multi_reduction <add>, %58, %cst_30 [1] : vector<16x8x8xf32> to vector<16x8xf32>
    %c0_31 = arith.constant 0 : index
    %c0_32 = arith.constant 0 : index
    %60 = vector.load %arg5[%c0_31, %c0_32] : memref<1x8xf32, #tpu.memory_space<vmem>>, vector<1x8xf32>
    %61 = vector.broadcast %60 : vector<1x8xf32> to vector<16x8xf32>
    %62 = arith.addf %59, %61 : vector<16x8xf32>
    %63 = tpu.transpose %62, [1, 0] : vector<16x8xf32> -> vector<8x16xf32>
    %c0_33 = arith.constant 0 : index
    %c0_34 = arith.constant 0 : index
    %c0_35 = arith.constant 0 : index
    %64 = vector.load %arg12[%c0_33, %c0_34, %c0_35] : memref<1x8x16xf32, #tpu.memory_space<vmem>>, vector<1x8x16xf32>
    %65 = vector.shape_cast %64 : vector<1x8x16xf32> to vector<8x16xf32>
    %66 = vector.shape_cast %63 : vector<8x16xf32> to vector<1x8x16xf32>
    tpu.vector_store %arg12[%c0_33, %c0_34, %c0_35], %66 {strides = array<i32>} : memref<1x8x16xf32, #tpu.memory_space<vmem>>, vector<1x8x16xf32>,
    return
  }
  func.func @transform_0(%arg0: i32, %arg1: i32) -> (i32, i32, i32) {
    %c0_i32 = arith.constant 0 : i32
    %c0_i32_0 = arith.constant 0 : i32
    return %arg0, %arg1, %c0_i32 : i32, i32, i32
  }
  func.func @transform_1(%arg0: i32, %arg1: i32) -> (i32, i32, i32, i32) {
    %c0_i32 = arith.constant 0 : i32
    %c0_i32_0 = arith.constant 0 : i32
    %c0_i32_1 = arith.constant 0 : i32
    return %arg0, %arg1, %c0_i32, %c0_i32_0 : i32, i32, i32, i32
  }
  func.func @transform_2(%arg0: i32, %arg1: i32) -> (i32, i32) {
    %c0_i32 = arith.constant 0 : i32
    %c0_i32_0 = arith.constant 0 : i32
    %c0_i32_1 = arith.constant 0 : i32
    return %c0_i32, %c0_i32_0 : i32, i32
  }
  func.func @transform_3(%arg0: i32, %arg1: i32) -> (i32, i32) {
    %c0_i32 = arith.constant 0 : i32
    %c0_i32_0 = arith.constant 0 : i32
    %c0_i32_1 = arith.constant 0 : i32
    return %c0_i32, %c0_i32_0 : i32, i32
  }
  func.func @transform_4(%arg0: i32, %arg1: i32) -> (i32, i32) {
    %c0_i32 = arith.constant 0 : i32
    %c0_i32_0 = arith.constant 0 : i32
    %c0_i32_1 = arith.constant 0 : i32
    return %c0_i32, %c0_i32_0 : i32, i32
  }
  func.func @transform_5(%arg0: i32, %arg1: i32) -> (i32, i32) {
    %c0_i32 = arith.constant 0 : i32
    %c0_i32_0 = arith.constant 0 : i32
    %c0_i32_1 = arith.constant 0 : i32
    return %c0_i32, %c0_i32_0 : i32, i32
  }
  func.func @transform_6(%arg0: i32, %arg1: i32) -> (i32, i32) {
    %c0_i32 = arith.constant 0 : i32
    %c0_i32_0 = arith.constant 0 : i32
    %c0_i32_1 = arith.constant 0 : i32
    return %c0_i32, %c0_i32_0 : i32, i32
  }
  func.func @transform_7(%arg0: i32, %arg1: i32) -> (i32, i32) {
    %c0_i32 = arith.constant 0 : i32
    %c0_i32_0 = arith.constant 0 : i32
    %c0_i32_1 = arith.constant 0 : i32
    return %c0_i32, %c0_i32_0 : i32, i32
  }
  func.func @transform_8(%arg0: i32, %arg1: i32) -> (i32, i32) {
    %c0_i32 = arith.constant 0 : i32
    %c0_i32_0 = arith.constant 0 : i32
    %c0_i32_1 = arith.constant 0 : i32
    return %c0_i32, %c0_i32_0 : i32, i32
  }
  func.func @transform_9(%arg0: i32, %arg1: i32) -> (i32, i32) {
    %c0_i32 = arith.constant 0 : i32
    %c0_i32_0 = arith.constant 0 : i32
    %c0_i32_1 = arith.constant 0 : i32
    return %c0_i32, %c0_i32_0 : i32, i32
  }
  func.func @transform_10(%arg0: i32, %arg1: i32) -> (i32, i32, i32) {
    %c0_i32 = arith.constant 0 : i32
    %c0_i32_0 = arith.constant 0 : i32
    return %arg0, %c0_i32, %arg1 : i32, i32, i32
  }
}

</mosaic_0001>

<llo_original>
// kernel: tpu_custom_call.1
$region0: #{tpu_custom_call.1}
  #allocation0 [shape = 'u32[]', space=smem, size = 0x4, offset = 0x4, fixed_abs, tag = 'smem constant byte address 0x4 - core index']
  #allocation1 [shape = 'u32[144,128]{1,0:T(1,128)}', space=vmem, size = 0x12000, scoped, tag = 'internal scratch']
  %s0 = inlined_call_operand.vmem [shape: f32[2,128,4], index: 0, kind: input, shape index: {}]
  %s1 = inlined_call_operand.vmem [shape: f32[2,16,8,3], index: 1, kind: input, shape index: {}]
  %s2 = inlined_call_operand.vmem [shape: f32[4,8], index: 2, kind: input, shape index: {}]
  %s3 = inlined_call_operand.vmem [shape: f32[1,8], index: 3, kind: input, shape index: {}]
  %s4 = inlined_call_operand.vmem [shape: f32[3,16], index: 4, kind: input, shape index: {}]
  %s5 = inlined_call_operand.vmem [shape: f32[1,16], index: 5, kind: input, shape index: {}]
  %s6 = inlined_call_operand.vmem [shape: f32[16,32], index: 6, kind: input, shape index: {}]
  %s7 = inlined_call_operand.vmem [shape: f32[1,32], index: 7, kind: input, shape index: {}]
  %s8 = inlined_call_operand.vmem [shape: f32[32,8], index: 8, kind: input, shape index: {}]
  %s9 = inlined_call_operand.vmem [shape: f32[1,8], index: 9, kind: input, shape index: {}]
  %s10 = inlined_call_operand.hbm [shape: f32[2,8,16], index: 10, kind: output, shape index: {}]
  %s11 = sld [smem:[#allocation0]]
  $region73: #{tpu_custom_call.1} parent=0
    _
  %s13 = ssub.s32 1, %s11
  %s14 = scalar_select 0, %s13, %s11
  $region1: #{tpu_custom_call.1} parent=0
    #allocation2 [shape = 'u8[8192]{0}', space=vmem, size = 0x2000, scoped, tag = 'output window, operand 0']
    #allocation3 [shape = 's32[2]{0}', space=sflag, size = 0x8, scoped, tag = 'scoped memory for tpu_custom_call.1']
    %15 = vsyncpa [#allocation3], 0
    %s16 = scalar_lea.sflag [#allocation3], 1
    %17 = vsyncpa %s16, 0
    loop: start=0, step=1, limit=4
    $region2: #{tpu_custom_call.1} parent=1 // loop_pre_header
      _
    $region3: #{tpu_custom_call.1} parent=1 // loop_header
      %s19 = sphi 0, %s23
      %p20 = scmp.ge.s32.totalorder %s19, 4
      %s26 = sphi 0, %s38
      %s27 = sphi 0, %s34
      %s28 = sphi 0, %s26
      %s29 = sphi 0, %s27
      %s30 = sphi 0, %s28
      %s31 = sphi 0, %s29
      %s43 = sphi 0, %s45
      %s46 = sphi 0, %s43
      %s47 = sphi 0, %s46
      %s63 = sphi 0, %s47
      %s71 = sphi 0, %s73
      %s74 = sphi 0, %s71
      %s75 = sphi 0, %s74
      %s91 = sphi 0, %s75
      %s95 = sphi 0, %s95
      %s97 = sphi 0, %s95
      %s98 = sphi 0, %s97
      %s112 = sphi 0, %s98
      %s116 = sphi 0, %s116
      %s118 = sphi 0, %s116
      %s119 = sphi 0, %s118
      %s133 = sphi 0, %s119
      %s137 = sphi 0, %s137
      %s139 = sphi 0, %s137
      %s140 = sphi 0, %s139
      %s154 = sphi 0, %s140
      %s158 = sphi 0, %s158
      %s160 = sphi 0, %s158
      %s161 = sphi 0, %s160
      %s175 = sphi 0, %s161
      %s179 = sphi 0, %s179
      %s181 = sphi 0, %s179
      %s182 = sphi 0, %s181
      %s196 = sphi 0, %s182
      %s200 = sphi 0, %s200
      %s202 = sphi 0, %s200
      %s203 = sphi 0, %s202
      %s217 = sphi 0, %s203
      %s221 = sphi 0, %s221
      %s223 = sphi 0, %s221
      %s224 = sphi 0, %s223
      %s238 = sphi 0, %s224
      %s242 = sphi 0, %s242
      %s244 = sphi 0, %s242
      %s245 = sphi 0, %s244
      %s259 = sphi 0, %s245
      %s267 = sphi 0, %s269
      %s270 = sphi 0, %s267
      %s271 = sphi 0, %s270
      %s287 = sphi 0, %s271
    $region4: #{tpu_custom_call.1} parent=1 // loop_header_branch
      %22 = sbr.rel (%p20) target = $region8
    $region5: #{tpu_custom_call.1} parent=1 // loop_body
      %s24 = ssub.s32 %s19, 1
      %s25 = ssub.s32 %s19, 2
      %s32 = sadd.s32 1, %s27
      %p33 = scmp.ge.s32.totalorder %s32, 1
      %s34 = scalar_select %p33, 0, %s32
      %s35 = sadd.s32 1, %s26
      %s36 = scalar_select %p33, %s35, %s26
      %p37 = scmp.ge.s32.totalorder %s36, 2
      %s38 = scalar_select %p37, 0, %s36
      %s39 = ssub.s32 %s26, %s38
      %s40 = ssub.s32 %s27, %s34
      %s41 = sor.u32 %s39, %s40
      %p42 = scmp.eq.s32.totalorder %s41, 0
      %s44 = sadd.s32 %s43, 1
      %s45 = scalar_select %p42, %s43, %s44
      %p48 = pneg %p42
      %p49 = scmp.eq.s32.totalorder %s19, 1
      %p50 = por %p48, %p49
      %p51 = scmp.ne.s32.totalorder %s43, %s46
      %p52 = scmp.eq.s32.totalorder %s19, 0
      %p53 = por %p51, %p52
      %p54 = scmp.ne.s32.totalorder %s43, %s46
      %p55 = scmp.eq.s32.totalorder %s24, 1
      %p56 = por %p54, %p55
      %p57 = scmp.ne.s32.totalorder %s46, %s47
      %p58 = scmp.eq.s32.totalorder %s24, 0
      %p59 = por %p57, %p58
      %p60 = scmp.ne.s32.totalorder %s46, %s47
      %p61 = scmp.eq.s32.totalorder %s25, 1
      %p62 = por %p60, %p61
      %p64 = scmp.ne.s32.totalorder %s47, %s63
      %p65 = scmp.eq.s32.totalorder %s25, 0
      %p66 = por %p64, %p65
      %s67 = ssub.s32 %s26, %s38
      %s68 = ssub.s32 %s27, %s34
      %s69 = sor.u32 %s67, %s68
      %p70 = scmp.eq.s32.totalorder %s69, 0
      %s72 = sadd.s32 %s71, 1
      %s73 = scalar_select %p70, %s71, %s72
      %p76 = pneg %p70
      %p77 = scmp.eq.s32.totalorder %s19, 1
      %p78 = por %p76, %p77
      %p79 = scmp.ne.s32.totalorder %s71, %s74
      %p80 = scmp.eq.s32.totalorder %s19, 0
      %p81 = por %p79, %p80
      %p82 = scmp.ne.s32.totalorder %s71, %s74
      %p83 = scmp.eq.s32.totalorder %s24, 1
      %p84 = por %p82, %p83
      %p85 = scmp.ne.s32.totalorder %s74, %s75
      %p86 = scmp.eq.s32.totalorder %s24, 0
      %p87 = por %p85, %p86
      %p88 = scmp.ne.s32.totalorder %s74, %s75
      %p89 = scmp.eq.s32.totalorder %s25, 1
      %p90 = por %p88, %p89
      %p92 = scmp.ne.s32.totalorder %s75, %s91
      %p93 = scmp.eq.s32.totalorder %s25, 0
      %p94 = por %p92, %p93
      %s96 = sadd.s32 %s95, 1
      %p99 = scmp.eq.s32.totalorder %s19, 1
      %p100 = scmp.ne.s32.totalorder %s95, %s97
      %p101 = scmp.eq.s32.totalorder %s19, 0
      %p102 = por %p100, %p101
      %p103 = scmp.ne.s32.totalorder %s95, %s97
      %p104 = scmp.eq.s32.totalorder %s24, 1
      %p105 = por %p103, %p104
      %p106 = scmp.ne.s32.totalorder %s97, %s98
      %p107 = scmp.eq.s32.totalorder %s24, 0
      %p108 = por %p106, %p107
      %p109 = scmp.ne.s32.totalorder %s97, %s98
      %p110 = scmp.eq.s32.totalorder %s25, 1
      %p111 = por %p109, %p110
      %p113 = scmp.ne.s32.totalorder %s98, %s112
      %p114 = scmp.eq.s32.totalorder %s25, 0
      %p115 = por %p113, %p114
      %s117 = sadd.s32 %s116, 1
      %p120 = scmp.eq.s32.totalorder %s19, 1
      %p121 = scmp.ne.s32.totalorder %s116, %s118
      %p122 = scmp.eq.s32.totalorder %s19, 0
      %p123 = por %p121, %p122
      %p124 = scmp.ne.s32.totalorder %s116, %s118
      %p125 = scmp.eq.s32.totalorder %s24, 1
      %p126 = por %p124, %p125
      %p127 = scmp.ne.s32.totalorder %s118, %s119
      %p128 = scmp.eq.s32.totalorder %s24, 0
      %p129 = por %p127, %p128
      %p130 = scmp.ne.s32.totalorder %s118, %s119
      %p131 = scmp.eq.s32.totalorder %s25, 1
      %p132 = por %p130, %p131
      %p134 = scmp.ne.s32.totalorder %s119, %s133
      %p135 = scmp.eq.s32.totalorder %s25, 0
      %p136 = por %p134, %p135
      %s138 = sadd.s32 %s137, 1
      %p141 = scmp.eq.s32.totalorder %s19, 1
      %p142 = scmp.ne.s32.totalorder %s137, %s139
      %p143 = scmp.eq.s32.totalorder %s19, 0
      %p144 = por %p142, %p143
      %p145 = scmp.ne.s32.totalorder %s137, %s139
      %p146 = scmp.eq.s32.totalorder %s24, 1
      %p147 = por %p145, %p146
      %p148 = scmp.ne.s32.totalorder %s139, %s140
      %p149 = scmp.eq.s32.totalorder %s24, 0
      %p150 = por %p148, %p149
      %p151 = scmp.ne.s32.totalorder %s139, %s140
      %p152 = scmp.eq.s32.totalorder %s25, 1
      %p153 = por %p151, %p152
      %p155 = scmp.ne.s32.totalorder %s140, %s154
      %p156 = scmp.eq.s32.totalorder %s25, 0
      %p157 = por %p155, %p156
      %s159 = sadd.s32 %s158, 1
      %p162 = scmp.eq.s32.totalorder %s19, 1
      %p163 = scmp.ne.s32.totalorder %s158, %s160
      %p164 = scmp.eq.s32.totalorder %s19, 0
      %p165 = por %p163, %p164
      %p166 = scmp.ne.s32.totalorder %s158, %s160
      %p167 = scmp.eq.s32.totalorder %s24, 1
      %p168 = por %p166, %p167
      %p169 = scmp.ne.s32.totalorder %s160, %s161
      %p170 = scmp.eq.s32.totalorder %s24, 0
      %p171 = por %p169, %p170
      %p172 = scmp.ne.s32.totalorder %s160, %s161
      %p173 = scmp.eq.s32.totalorder %s25, 1
      %p174 = por %p172, %p173
      %p176 = scmp.ne.s32.totalorder %s161, %s175
      %p177 = scmp.eq.s32.totalorder %s25, 0
      %p178 = por %p176, %p177
      %s180 = sadd.s32 %s179, 1
      %p183 = scmp.eq.s32.totalorder %s19, 1
      %p184 = scmp.ne.s32.totalorder %s179, %s181
      %p185 = scmp.eq.s32.totalorder %s19, 0
      %p186 = por %p184, %p185
      %p187 = scmp.ne.s32.totalorder %s179, %s181
      %p188 = scmp.eq.s32.totalorder %s24, 1
      %p189 = por %p187, %p188
      %p190 = scmp.ne.s32.totalorder %s181, %s182
      %p191 = scmp.eq.s32.totalorder %s24, 0
      %p192 = por %p190, %p191
      %p193 = scmp.ne.s32.totalorder %s181, %s182
      %p194 = scmp.eq.s32.totalorder %s25, 1
      %p195 = por %p193, %p194
      %p197 = scmp.ne.s32.totalorder %s182, %s196
      %p198 = scmp.eq.s32.totalorder %s25, 0
      %p199 = por %p197, %p198
      %s201 = sadd.s32 %s200, 1
      %p204 = scmp.eq.s32.totalorder %s19, 1
      %p205 = scmp.ne.s32.totalorder %s200, %s202
      %p206 = scmp.eq.s32.totalorder %s19, 0
      %p207 = por %p205, %p206
      %p208 = scmp.ne.s32.totalorder %s200, %s202
      %p209 = scmp.eq.s32.totalorder %s24, 1
      %p210 = por %p208, %p209
      %p211 = scmp.ne.s32.totalorder %s202, %s203
      %p212 = scmp.eq.s32.totalorder %s24, 0
      %p213 = por %p211, %p212
      %p214 = scmp.ne.s32.totalorder %s202, %s203
      %p215 = scmp.eq.s32.totalorder %s25, 1
      %p216 = por %p214, %p215
      %p218 = scmp.ne.s32.totalorder %s203, %s217
      %p219 = scmp.eq.s32.totalorder %s25, 0
      %p220 = por %p218, %p219
      %s222 = sadd.s32 %s221, 1
      %p225 = scmp.eq.s32.totalorder %s19, 1
      %p226 = scmp.ne.s32.totalorder %s221, %s223
      %p227 = scmp.eq.s32.totalorder %s19, 0
      %p228 = por %p226, %p227
      %p229 = scmp.ne.s32.totalorder %s221, %s223
      %p230 = scmp.eq.s32.totalorder %s24, 1
      %p231 = por %p229, %p230
      %p232 = scmp.ne.s32.totalorder %s223, %s224
      %p233 = scmp.eq.s32.totalorder %s24, 0
      %p234 = por %p232, %p233
      %p235 = scmp.ne.s32.totalorder %s223, %s224
      %p236 = scmp.eq.s32.totalorder %s25, 1
      %p237 = por %p235, %p236
      %p239 = scmp.ne.s32.totalorder %s224, %s238
      %p240 = scmp.eq.s32.totalorder %s25, 0
      %p241 = por %p239, %p240
      %s243 = sadd.s32 %s242, 1
      %p246 = scmp.eq.s32.totalorder %s19, 1
      %p247 = scmp.ne.s32.totalorder %s242, %s244
      %p248 = scmp.eq.s32.totalorder %s19, 0
      %p249 = por %p247, %p248
      %p250 = scmp.ne.s32.totalorder %s242, %s244
      %p251 = scmp.eq.s32.totalorder %s24, 1
      %p252 = por %p250, %p251
      %p253 = scmp.ne.s32.totalorder %s244, %s245
      %p254 = scmp.eq.s32.totalorder %s24, 0
      %p255 = por %p253, %p254
      %p256 = scmp.ne.s32.totalorder %s244, %s245
      %p257 = scmp.eq.s32.totalorder %s25, 1
      %p258 = por %p256, %p257
      %p260 = scmp.ne.s32.totalorder %s245, %s259
      %p261 = scmp.eq.s32.totalorder %s25, 0
      %p262 = por %p260, %p261
      %s263 = ssub.s32 %s26, %s38
      %s264 = ssub.s32 %s27, %s34
      %s265 = sor.u32 %s263, %s264
      %p266 = scmp.eq.s32.totalorder %s265, 0
      %s268 = sadd.s32 %s267, 1
      %s269 = scalar_select %p266, %s267, %s268
      %p272 = pneg %p266
      %p273 = scmp.eq.s32.totalorder %s19, 1
      %p274 = por %p272, %p273
      %p275 = scmp.ne.s32.totalorder %s267, %s270
      %p276 = scmp.eq.s32.totalorder %s19, 0
      %p277 = por %p275, %p276
      %p278 = scmp.ne.s32.totalorder %s267, %s270
      %p279 = scmp.eq.s32.totalorder %s24, 1
      %p280 = por %p278, %p279
      %p281 = scmp.ne.s32.totalorder %s270, %s271
      %p282 = scmp.eq.s32.totalorder %s24, 0
      %p283 = por %p281, %p282
      %p284 = scmp.ne.s32.totalorder %s270, %s271
      %p285 = scmp.eq.s32.totalorder %s25, 1
      %p286 = por %p284, %p285
      %p288 = scmp.ne.s32.totalorder %s271, %s287
      %p289 = scmp.eq.s32.totalorder %s25, 0
      %p290 = por %p288, %p289
      %p291 = scmp.le.s32.totalorder 1, %s19
      %p292 = scmp.lt.s32.totalorder %s19, 3
      %p293 = pnand %p291, %p292
      %p294 = pneg %p293
      // Predicated region
      $region9: #{tpu_custom_call.1} parent=5 // pred_check
        _
      $region10: #{tpu_custom_call.1} parent=5 // pred_check_branch
        %296 = sbr.rel (%p293) target = $region12
      $region11: #{tpu_custom_call.1} parent=5 // pred_region
        %s297 = ssub.s32 %s19, 1
        // Predicated region
        $region13: #{tpu_custom_call.1} parent=11 // pred_check
          %p298 = pneg %p108
        $region14: #{tpu_custom_call.1} parent=11 // pred_check_branch
          %300 = sbr.rel (%p298) target = $region16
        $region15: #{tpu_custom_call.1} parent=11 // pred_region
          _
        $region16: #{tpu_custom_call.1} parent=11 // pred_fallthru
          _
        // Predicated region
        $region17: #{tpu_custom_call.1} parent=11 // pred_check
          %p301 = pneg %p129
        $region18: #{tpu_custom_call.1} parent=11 // pred_check_branch
          %303 = sbr.rel (%p301) target = $region20
        $region19: #{tpu_custom_call.1} parent=11 // pred_region
          _
        $region20: #{tpu_custom_call.1} parent=11 // pred_fallthru
          _
        // Predicated region
        $region21: #{tpu_custom_call.1} parent=11 // pred_check
          %p304 = pneg %p150
        $region22: #{tpu_custom_call.1} parent=11 // pred_check_branch
          %306 = sbr.rel (%p304) target = $region24
        $region23: #{tpu_custom_call.1} parent=11 // pred_region
          _
        $region24: #{tpu_custom_call.1} parent=11 // pred_fallthru
          _
        // Predicated region
        $region25: #{tpu_custom_call.1} parent=11 // pred_check
          %p307 = pneg %p171
        $region26: #{tpu_custom_call.1} parent=11 // pred_check_branch
          %309 = sbr.rel (%p307) target = $region28
        $region27: #{tpu_custom_call.1} parent=11 // pred_region
          _
        $region28: #{tpu_custom_call.1} parent=11 // pred_fallthru
          _
        // Predicated region
        $region29: #{tpu_custom_call.1} parent=11 // pred_check
          %p310 = pneg %p192
        $region30: #{tpu_custom_call.1} parent=11 // pred_check_branch
          %312 = sbr.rel (%p310) target = $region32
        $region31: #{tpu_custom_call.1} parent=11 // pred_region
          _
        $region32: #{tpu_custom_call.1} parent=11 // pred_fallthru
          _
        // Predicated region
        $region33: #{tpu_custom_call.1} parent=11 // pred_check
          %p313 = pneg %p213
        $region34: #{tpu_custom_call.1} parent=11 // pred_check_branch
          %315 = sbr.rel (%p313) target = $region36
        $region35: #{tpu_custom_call.1} parent=11 // pred_region
          _
        $region36: #{tpu_custom_call.1} parent=11 // pred_fallthru
          _
        // Predicated region
        $region37: #{tpu_custom_call.1} parent=11 // pred_check
          %p316 = pneg %p234
        $region38: #{tpu_custom_call.1} parent=11 // pred_check_branch
          %318 = sbr.rel (%p316) target = $region40
        $region39: #{tpu_custom_call.1} parent=11 // pred_region
          _
        $region40: #{tpu_custom_call.1} parent=11 // pred_fallthru
          _
        // Predicated region
        $region41: #{tpu_custom_call.1} parent=11 // pred_check
          %p319 = pneg %p255
        $region42: #{tpu_custom_call.1} parent=11 // pred_check_branch
          %321 = sbr.rel (%p319) target = $region44
        $region43: #{tpu_custom_call.1} parent=11 // pred_region
          _
        $region44: #{tpu_custom_call.1} parent=11 // pred_fallthru
          _
      $region12: #{tpu_custom_call.1} parent=5 // pred_fallthru
        _
      %p322 = scmp.lt.s32.totalorder %s19, 2
      // Predicated region
      $region45: #{tpu_custom_call.1} parent=5 // pred_check
        %p323 = pneg %p322
      $region46: #{tpu_custom_call.1} parent=5 // pred_check_branch
        %325 = sbr.rel (%p323) target = $region48
      $region47: #{tpu_custom_call.1} parent=5 // pred_region
        // Predicated region
        $region49: #{tpu_custom_call.1} parent=47 // pred_check
          %p326 = pneg %p53
        $region50: #{tpu_custom_call.1} parent=47 // pred_check_branch
          %328 = sbr.rel (%p326) target = $region52
        $region51: #{tpu_custom_call.1} parent=47 // pred_region
          %s329 = smul.u32 16, %s27
          %p330 = scmp.lt.s32.totalorder %s26, 1
          %s331 = scalar_select %p330, %s26, 1
          %p332 = scmp.lt.s32.totalorder %s329, 15
          %s333 = scalar_select %p332, %s329, 15
          %s334 = smul.addr %s331, 16
          %s335 = sadd.s32 %s333, %s334
          %s336 = smul.addr %s335, 8
          %s337 = scalar_lea.vmem %s0, %s336
          %s338 = smul.u32 16, %s27
        $region52: #{tpu_custom_call.1} parent=47 // pred_fallthru
          _
        // Predicated region
        $region53: #{tpu_custom_call.1} parent=47 // pred_check
          %p339 = pneg %p81
        $region54: #{tpu_custom_call.1} parent=47 // pred_check_branch
          %341 = sbr.rel (%p339) target = $region56
        $region55: #{tpu_custom_call.1} parent=47 // pred_region
          %s342 = smul.u32 16, %s27
          %p343 = scmp.lt.s32.totalorder %s26, 1
          %s344 = scalar_select %p343, %s26, 1
          %p345 = scmp.lt.s32.totalorder %s342, 15
          %s346 = scalar_select %p345, %s342, 15
          %s347 = smul.addr %s344, 16
          %s348 = sadd.s32 %s346, %s347
          %s349 = smul.addr %s348, 8
          %s350 = scalar_lea.vmem %s1, %s349
          %s351 = smul.u32 16, %s27
        $region56: #{tpu_custom_call.1} parent=47 // pred_fallthru
          _
      $region48: #{tpu_custom_call.1} parent=5 // pred_fallthru
        _
      %p352 = scmp.le.s32.totalorder 1, %s19
      %p353 = scmp.lt.s32.totalorder %s19, 3
      %p354 = pnand %p352, %p353
      %p355 = pneg %p354
      // Predicated region
      $region57: #{tpu_custom_call.1} parent=5 // pred_check
        _
      $region58: #{tpu_custom_call.1} parent=5 // pred_check_branch
        %357 = sbr.rel (%p354) target = $region60
      $region59: #{tpu_custom_call.1} parent=5 // pred_region
        %s358 = ssub.s32 %s19, 1
        %s359 = smul.u32 16, %s29
        %p360 = scmp.lt.s32.totalorder %s28, 1
        %s361 = scalar_select %p360, %s28, 1
        %p362 = scmp.lt.s32.totalorder %s359, 15
        %s363 = scalar_select %p362, %s359, 15
        %s364 = smul.addr %s361, 16
        %s365 = sadd.s32 %s363, %s364
        %s366 = smul.addr %s365, 8
        %s367 = scalar_lea.vmem %s0, %s366
        %p368 = pneg %p59
        %p369 = pneg %p56
        %s370 = smul.u32 16, %s29
        %p371 = scmp.lt.s32.totalorder %s28, 1
        %s372 = scalar_select %p371, %s28, 1
        %p373 = scmp.lt.s32.totalorder %s370, 15
        %s374 = scalar_select %p373, %s370, 15
        %s375 = smul.addr %s372, 16
        %s376 = sadd.s32 %s374, %s375
        %s377 = smul.addr %s376, 8
        %s378 = scalar_lea.vmem %s1, %s377
        %p379 = pneg %p87
        %p380 = pneg %p84
        %p381 = pneg %p108
        %p382 = pneg %p105
        %p383 = pneg %p129
        %p384 = pneg %p126
        %p385 = pneg %p150
        %p386 = pneg %p147
        %p387 = pneg %p171
        %p388 = pneg %p168
        %p389 = pneg %p192
        %p390 = pneg %p189
        %p391 = pneg %p213
        %p392 = pneg %p210
        %p393 = pneg %p234
        %p394 = pneg %p231
        %p395 = pneg %p255
        %p396 = pneg %p252
        %p397 = pneg %p283
        %p398 = pneg %p280
        %s399 = sand.u32 %s270, 1
        %s400 = scalar_lea.sflag [#allocation3], %s399
        %s401 = sand.u32 %s270, 1
        %s402 = smul.addr %s401, 8
        %s403 = scalar_lea.vmem [#allocation2], %s402
        %s404 = smul.u32 16, %s29
        %p405 = scmp.lt.s32.totalorder %s28, 1
        %s406 = scalar_select %p405, %s28, 1
        %p407 = scmp.lt.s32.totalorder %s404, 15
        %s408 = scalar_select %p407, %s404, 15
        %s409 = smul.addr %s406, 16
        %s410 = sadd.s32 %s408, %s409
        %s411 = smul.addr %s410, 8
        %s412 = scalar_lea.vmem %s0, %s411
        %s413 = smul.u32 16, %s29
        %s414 = smul.u32 16, %s29
        %p415 = scmp.lt.s32.totalorder %s28, 1
        %s416 = scalar_select %p415, %s28, 1
        %p417 = scmp.lt.s32.totalorder %s414, 15
        %s418 = scalar_select %p417, %s414, 15
        %s419 = smul.addr %s416, 16
        %s420 = sadd.s32 %s418, %s419
        %s421 = smul.addr %s420, 8
        %s422 = scalar_lea.vmem %s1, %s421
        %s423 = smul.u32 16, %s29
        %v424 = vld [vmem:[%s412] sm:$0xff]
        %v425 = vld [vmem:[%s412 + $0x8] sm:$0xff]
        %v426 = vld [vmem:[%s412 + $0x10] sm:$0xff]
        %v427 = vld [vmem:[%s412 + $0x18] sm:$0xff]
        %v428 = vld [vmem:[%s412 + $0x20] sm:$0xff]
        %v429 = vld [vmem:[%s412 + $0x28] sm:$0xff]
        %v430 = vld [vmem:[%s412 + $0x30] sm:$0xff]
        %v431 = vld [vmem:[%s412 + $0x38] sm:$0xff]
        %v432 = vld [vmem:[%s412 + $0x40] sm:$0xff]
        %v433 = vld [vmem:[%s412 + $0x48] sm:$0xff]
        %v434 = vld [vmem:[%s412 + $0x50] sm:$0xff]
        %v435 = vld [vmem:[%s412 + $0x58] sm:$0xff]
        %v436 = vld [vmem:[%s412 + $0x60] sm:$0xff]
        %v437 = vld [vmem:[%s412 + $0x68] sm:$0xff]
        %v438 = vld [vmem:[%s412 + $0x70] sm:$0xff]
        %v439 = vld [vmem:[%s412 + $0x78] sm:$0xff]
        %v440 = vld [vmem:[%s422] sm:$0xff]
        %v441 = vld [vmem:[%s422 + $0x8] sm:$0xff]
        %v442 = vld [vmem:[%s422 + $0x10] sm:$0xff]
        %v443 = vld [vmem:[%s422 + $0x18] sm:$0xff]
        %v444 = vld [vmem:[%s422 + $0x20] sm:$0xff]
        %v445 = vld [vmem:[%s422 + $0x28] sm:$0xff]
        %v446 = vld [vmem:[%s422 + $0x30] sm:$0xff]
        %v447 = vld [vmem:[%s422 + $0x38] sm:$0xff]
        %v448 = vld [vmem:[%s422 + $0x40] sm:$0xff]
        %v449 = vld [vmem:[%s422 + $0x48] sm:$0xff]
        %v450 = vld [vmem:[%s422 + $0x50] sm:$0xff]
        %v451 = vld [vmem:[%s422 + $0x58] sm:$0xff]
        %v452 = vld [vmem:[%s422 + $0x60] sm:$0xff]
        %v453 = vld [vmem:[%s422 + $0x68] sm:$0xff]
        %v454 = vld [vmem:[%s422 + $0x70] sm:$0xff]
        %v455 = vld [vmem:[%s422 + $0x78] sm:$0xff]
        %v456 = vmul.f32 %v440, %v440
        %v457 = vmul.f32 %v441, %v441
        %v458 = vmul.f32 %v442, %v442
        %v459 = vmul.f32 %v443, %v443
        %v460 = vmul.f32 %v444, %v444
        %v461 = vmul.f32 %v445, %v445
        %v462 = vmul.f32 %v446, %v446
        %v463 = vmul.f32 %v447, %v447
        %v464 = vmul.f32 %v448, %v448
        %v465 = vmul.f32 %v449, %v449
        %v466 = vmul.f32 %v450, %v450
        %v467 = vmul.f32 %v451, %v451
        %v468 = vmul.f32 %v452, %v452
        %v469 = vmul.f32 %v453, %v453
        %v470 = vmul.f32 %v454, %v454
        %v471 = vmul.f32 %v455, %v455
        %vm472 = vcmask 23552
        %v473 = vsel %vm472, %v456, 0.0
        %474 = vadd.xlane.f32.xlu0 %v473
        %v475 = vpop.xlane.xlu0 %474
        %v476 = vsel %vm472, %v457, 0.0
        %477 = vadd.xlane.f32.xlu0 %v476
        %v478 = vpop.xlane.xlu0 %477
        %v479 = vsel %vm472, %v458, 0.0
        %480 = vadd.xlane.f32.xlu0 %v479
        %v481 = vpop.xlane.xlu0 %480
        %v482 = vsel %vm472, %v459, 0.0
        %483 = vadd.xlane.f32.xlu0 %v482
        %v484 = vpop.xlane.xlu0 %483
        %v485 = vsel %vm472, %v460, 0.0
        %486 = vadd.xlane.f32.xlu0 %v485
        %v487 = vpop.xlane.xlu0 %486
        %v488 = vsel %vm472, %v461, 0.0
        %489 = vadd.xlane.f32.xlu0 %v488
        %v490 = vpop.xlane.xlu0 %489
        %v491 = vsel %vm472, %v462, 0.0
        %492 = vadd.xlane.f32.xlu0 %v491
        %v493 = vpop.xlane.xlu0 %492
        %v494 = vsel %vm472, %v463, 0.0
        %495 = vadd.xlane.f32.xlu0 %v494
        %v496 = vpop.xlane.xlu0 %495
        %v497 = vsel %vm472, %v464, 0.0
        %498 = vadd.xlane.f32.xlu0 %v497
        %v499 = vpop.xlane.xlu0 %498
        %v500 = vsel %vm472, %v465, 0.0
        %501 = vadd.xlane.f32.xlu0 %v500
        %v502 = vpop.xlane.xlu0 %501
        %v503 = vsel %vm472, %v466, 0.0
        %504 = vadd.xlane.f32.xlu0 %v503
        %v505 = vpop.xlane.xlu0 %504
        %v506 = vsel %vm472, %v467, 0.0
        %507 = vadd.xlane.f32.xlu0 %v506
        %v508 = vpop.xlane.xlu0 %507
        %v509 = vsel %vm472, %v468, 0.0
        %510 = vadd.xlane.f32.xlu0 %v509
        %v511 = vpop.xlane.xlu0 %510
        %v512 = vsel %vm472, %v469, 0.0
        %513 = vadd.xlane.f32.xlu0 %v512
        %v514 = vpop.xlane.xlu0 %513
        %v515 = vsel %vm472, %v470, 0.0
        %516 = vadd.xlane.f32.xlu0 %v515
        %v517 = vpop.xlane.xlu0 %516
        %v518 = vsel %vm472, %v471, 0.0
        %519 = vadd.xlane.f32.xlu0 %v518
        %v520 = vpop.xlane.xlu0 %519
        %v537 = vlaneseq
        %v538 = vand.u32 %v537, 127
        %v539 = vlaneseq
        %v540 = vshrl.u32 %v539, 7
        %v541 = vsub.s32 %v538, %v540
        %v542 = vrot.slane %v475, %v541
        %v543 = vlaneseq
        %v544 = vshrl.u32 %v543, 7
        %v545 = vsub.s32 %v538, %v544
        %v546 = vrot.slane %v478, %v545
        %v547 = vlaneseq
        %v548 = vshrl.u32 %v547, 7
        %v549 = vsub.s32 %v538, %v548
        %v550 = vrot.slane %v481, %v549
        %v551 = vlaneseq
        %v552 = vshrl.u32 %v551, 7
        %v553 = vsub.s32 %v538, %v552
        %v554 = vrot.slane %v484, %v553
        %v555 = vlaneseq
        %v556 = vshrl.u32 %v555, 7
        %v557 = vsub.s32 %v538, %v556
        %v558 = vrot.slane %v487, %v557
        %v559 = vlaneseq
        %v560 = vshrl.u32 %v559, 7
        %v561 = vsub.s32 %v538, %v560
        %v562 = vrot.slane %v490, %v561
        %v563 = vlaneseq
        %v564 = vshrl.u32 %v563, 7
        %v565 = vsub.s32 %v538, %v564
        %v566 = vrot.slane %v493, %v565
        %v567 = vlaneseq
        %v568 = vshrl.u32 %v567, 7
        %v569 = vsub.s32 %v538, %v568
        %v570 = vrot.slane %v496, %v569
        %v571 = vlaneseq
        %v572 = vshrl.u32 %v571, 7
        %v573 = vsub.s32 %v538, %v572
        %v574 = vrot.slane %v499, %v573
        %v575 = vlaneseq
        %v576 = vshrl.u32 %v575, 7
        %v577 = vsub.s32 %v538, %v576
        %v578 = vrot.slane %v502, %v577
        %v579 = vlaneseq
        %v580 = vshrl.u32 %v579, 7
        %v581 = vsub.s32 %v538, %v580
        %v582 = vrot.slane %v505, %v581
        %v583 = vlaneseq
        %v584 = vshrl.u32 %v583, 7
        %v585 = vsub.s32 %v538, %v584
        %v586 = vrot.slane %v508, %v585
        %v587 = vlaneseq
        %v588 = vshrl.u32 %v587, 7
        %v589 = vsub.s32 %v538, %v588
        %v590 = vrot.slane %v511, %v589
        %v591 = vlaneseq
        %v592 = vshrl.u32 %v591, 7
        %v593 = vsub.s32 %v538, %v592
        %v594 = vrot.slane %v514, %v593
        %v595 = vlaneseq
        %v596 = vshrl.u32 %v595, 7
        %v597 = vsub.s32 %v538, %v596
        %v598 = vrot.slane %v517, %v597
        %v599 = vlaneseq
        %v600 = vshrl.u32 %v599, 7
        %v601 = vsub.s32 %v538, %v600
        %v602 = vrot.slane %v520, %v601
        %vm603 = vcmask 1041409
        %v604 = vsel %vm603, %v546, %v542
        %vm605 = vcmask 1042434
        %v606 = vsel %vm605, %v550, %v604
        %vm607 = vcmask 1043459
        %v608 = vsel %vm607, %v554, %v606
        %vm609 = vcmask 1044484
        %v610 = vsel %vm609, %v558, %v608
        %vm611 = vcmask 1045509
        %v612 = vsel %vm611, %v562, %v610
        %vm613 = vcmask 1046534
        %v614 = vsel %vm613, %v566, %v612
        %vm615 = vcmask 1047559
        %v616 = vsel %vm615, %v570, %v614
        %v617 = vsel %vm603, %v578, %v574
        %v618 = vsel %vm605, %v582, %v617
        %v619 = vsel %vm607, %v586, %v618
        %v620 = vsel %vm609, %v590, %v619
        %v621 = vsel %vm611, %v594, %v620
        %v622 = vsel %vm613, %v598, %v621
        %v623 = vsel %vm615, %v602, %v622
        %vm626 = vcmask 64512
        %v627 = vsel %vm626, %v616, -inf
        %628 = vmax.xlane.f32.xlu0 %v627
        %v629 = vpop.xlane.xlu0 %628
        %v630 = vsel %vm626, %v623, -inf
        %631 = vmax.xlane.f32.xlu0 %v630
        %v632 = vpop.xlane.xlu0 %631
        %vm633 = vcmp.gt.f32.partialorder %v629, 0.0
        %vm634 = vcmp.gt.f32.partialorder %v632, 0.0
        %v635 = vrsqrt.pop %v629
        %v636 = vrsqrt.pop %v632
        %v637 = vsel %vm633, %v635, 1.0
        %v638 = vsel %vm634, %v636, 1.0
        %v641 = vlaneseq
        %v642 = vshrl.u32 %v641, 7
        %v643 = vsub.s32 0, %v642
        %v644 = vrot.slane %v637, %v643
        %v645 = vlaneseq
        %v646 = vshrl.u32 %v645, 7
        %v647 = vsub.s32 1, %v646
        %v648 = vrot.slane %v637, %v647
        %v649 = vlaneseq
        %v650 = vshrl.u32 %v649, 7
        %v651 = vsub.s32 2, %v650
        %v652 = vrot.slane %v637, %v651
        %v653 = vlaneseq
        %v654 = vshrl.u32 %v653, 7
        %v655 = vsub.s32 3, %v654
        %v656 = vrot.slane %v637, %v655
        %v657 = vlaneseq
        %v658 = vshrl.u32 %v657, 7
        %v659 = vsub.s32 4, %v658
        %v660 = vrot.slane %v637, %v659
        %v661 = vlaneseq
        %v662 = vshrl.u32 %v661, 7
        %v663 = vsub.s32 5, %v662
        %v664 = vrot.slane %v637, %v663
        %v665 = vlaneseq
        %v666 = vshrl.u32 %v665, 7
        %v667 = vsub.s32 6, %v666
        %v668 = vrot.slane %v637, %v667
        %v669 = vlaneseq
        %v670 = vshrl.u32 %v669, 7
        %v671 = vsub.s32 7, %v670
        %v672 = vrot.slane %v637, %v671
        %v673 = vlaneseq
        %v674 = vshrl.u32 %v673, 7
        %v675 = vsub.s32 0, %v674
        %v676 = vrot.slane %v638, %v675
        %v677 = vlaneseq
        %v678 = vshrl.u32 %v677, 7
        %v679 = vsub.s32 1, %v678
        %v680 = vrot.slane %v638, %v679
        %v681 = vlaneseq
        %v682 = vshrl.u32 %v681, 7
        %v683 = vsub.s32 2, %v682
        %v684 = vrot.slane %v638, %v683
        %v685 = vlaneseq
        %v686 = vshrl.u32 %v685, 7
        %v687 = vsub.s32 3, %v686
        %v688 = vrot.slane %v638, %v687
        %v689 = vlaneseq
        %v690 = vshrl.u32 %v689, 7
        %v691 = vsub.s32 4, %v690
        %v692 = vrot.slane %v638, %v691
        %v693 = vlaneseq
        %v694 = vshrl.u32 %v693, 7
        %v695 = vsub.s32 5, %v694
        %v696 = vrot.slane %v638, %v695
        %v697 = vlaneseq
        %v698 = vshrl.u32 %v697, 7
        %v699 = vsub.s32 6, %v698
        %v700 = vrot.slane %v638, %v699
        %v701 = vlaneseq
        %v702 = vshrl.u32 %v701, 7
        %v703 = vsub.s32 7, %v702
        %v704 = vrot.slane %v638, %v703
        %v721 = vmul.f32 %v440, %v644
        %v722 = vmul.f32 %v441, %v648
        %v723 = vmul.f32 %v442, %v652
        %v724 = vmul.f32 %v443, %v656
        %v725 = vmul.f32 %v444, %v660
        %v726 = vmul.f32 %v445, %v664
        %v727 = vmul.f32 %v446, %v668
        %v728 = vmul.f32 %v447, %v672
        %v729 = vmul.f32 %v448, %v676
        %v730 = vmul.f32 %v449, %v680
        %v731 = vmul.f32 %v450, %v684
        %v732 = vmul.f32 %v451, %v688
        %v733 = vmul.f32 %v452, %v692
        %v734 = vmul.f32 %v453, %v696
        %v735 = vmul.f32 %v454, %v700
        %v736 = vmul.f32 %v455, %v704
        %v737 = vld [vmem:[%s4] sm:$0x1]
        %739 = vset.pattern.permute.xlu0 0
        %740 = vperm.xlu0 %739, %v721
        %v741 = vpop.permute.xlu0 %740
        %744 = vset.pattern.permute.xlu0 0
        %745 = vperm.xlu0 %744, %v722
        %v746 = vpop.permute.xlu0 %745
        %749 = vset.pattern.permute.xlu0 0
        %750 = vperm.xlu0 %749, %v723
        %v751 = vpop.permute.xlu0 %750
        %754 = vset.pattern.permute.xlu0 0
        %755 = vperm.xlu0 %754, %v724
        %v756 = vpop.permute.xlu0 %755
        %759 = vset.pattern.permute.xlu0 0
        %760 = vperm.xlu0 %759, %v725
        %v761 = vpop.permute.xlu0 %760
        %764 = vset.pattern.permute.xlu0 0
        %765 = vperm.xlu0 %764, %v726
        %v766 = vpop.permute.xlu0 %765
        %769 = vset.pattern.permute.xlu0 0
        %770 = vperm.xlu0 %769, %v727
        %v771 = vpop.permute.xlu0 %770
        %774 = vset.pattern.permute.xlu0 0
        %775 = vperm.xlu0 %774, %v728
        %v776 = vpop.permute.xlu0 %775
        %779 = vset.pattern.permute.xlu0 0
        %780 = vperm.xlu0 %779, %v729
        %v781 = vpop.permute.xlu0 %780
        %784 = vset.pattern.permute.xlu0 0
        %785 = vperm.xlu0 %784, %v730
        %v786 = vpop.permute.xlu0 %785
        %789 = vset.pattern.permute.xlu0 0
        %790 = vperm.xlu0 %789, %v731
        %v791 = vpop.permute.xlu0 %790
        %794 = vset.pattern.permute.xlu0 0
        %795 = vperm.xlu0 %794, %v732
        %v796 = vpop.permute.xlu0 %795
        %799 = vset.pattern.permute.xlu0 0
        %800 = vperm.xlu0 %799, %v733
        %v801 = vpop.permute.xlu0 %800
        %804 = vset.pattern.permute.xlu0 0
        %805 = vperm.xlu0 %804, %v734
        %v806 = vpop.permute.xlu0 %805
        %809 = vset.pattern.permute.xlu0 0
        %810 = vperm.xlu0 %809, %v735
        %v811 = vpop.permute.xlu0 %810
        %814 = vset.pattern.permute.xlu0 0
        %815 = vperm.xlu0 %814, %v736
        %v816 = vpop.permute.xlu0 %815
        %v818 = vlaneseq
        %v819 = vshrl.u32 %v818, 7
        %v820 = vsub.s32 0, %v819
        %v821 = vrot.slane %v737, %v820
        %v822 = vmul.f32 %v741, %v821
        %v823 = vmul.f32 %v746, %v821
        %v824 = vmul.f32 %v751, %v821
        %v825 = vmul.f32 %v756, %v821
        %v826 = vmul.f32 %v761, %v821
        %v827 = vmul.f32 %v766, %v821
        %v828 = vmul.f32 %v771, %v821
        %v829 = vmul.f32 %v776, %v821
        %v830 = vmul.f32 %v781, %v821
        %v831 = vmul.f32 %v786, %v821
        %v832 = vmul.f32 %v791, %v821
        %v833 = vmul.f32 %v796, %v821
        %v834 = vmul.f32 %v801, %v821
        %v835 = vmul.f32 %v806, %v821
        %v836 = vmul.f32 %v811, %v821
        %v837 = vmul.f32 %v816, %v821
        %v838 = vld [vmem:[%s5] sm:$0x1]
        %v840 = vlaneseq
        %v841 = vshrl.u32 %v840, 7
        %v842 = vsub.s32 0, %v841
        %v843 = vrot.slane %v838, %v842
        %v845 = vadd.f32 %v822, %v843
        %v846 = vadd.f32 %v823, %v843
        %v847 = vadd.f32 %v824, %v843
        %v848 = vadd.f32 %v825, %v843
        %v849 = vadd.f32 %v826, %v843
        %v850 = vadd.f32 %v827, %v843
        %v851 = vadd.f32 %v828, %v843
        %v852 = vadd.f32 %v829, %v843
        %v853 = vadd.f32 %v830, %v843
        %v854 = vadd.f32 %v831, %v843
        %v855 = vadd.f32 %v832, %v843
        %v856 = vadd.f32 %v833, %v843
        %v857 = vadd.f32 %v834, %v843
        %v858 = vadd.f32 %v835, %v843
        %v859 = vadd.f32 %v836, %v843
        %v860 = vadd.f32 %v837, %v843
        %v861 = vld [vmem:[%s4 + $0x1] sm:$0x1]
        %862 = vset.pattern.permute.xlu0 1
        %863 = vperm.xlu0 %862, %v721
        %v864 = vpop.permute.xlu0 %863
        %866 = vset.pattern.permute.xlu0 1
        %867 = vperm.xlu0 %866, %v722
        %v868 = vpop.permute.xlu0 %867
        %870 = vset.pattern.permute.xlu0 1
        %871 = vperm.xlu0 %870, %v723
        %v872 = vpop.permute.xlu0 %871
        %874 = vset.pattern.permute.xlu0 1
        %875 = vperm.xlu0 %874, %v724
        %v876 = vpop.permute.xlu0 %875
        %878 = vset.pattern.permute.xlu0 1
        %879 = vperm.xlu0 %878, %v725
        %v880 = vpop.permute.xlu0 %879
        %882 = vset.pattern.permute.xlu0 1
        %883 = vperm.xlu0 %882, %v726
        %v884 = vpop.permute.xlu0 %883
        %886 = vset.pattern.permute.xlu0 1
        %887 = vperm.xlu0 %886, %v727
        %v888 = vpop.permute.xlu0 %887
        %890 = vset.pattern.permute.xlu0 1
        %891 = vperm.xlu0 %890, %v728
        %v892 = vpop.permute.xlu0 %891
        %894 = vset.pattern.permute.xlu0 1
        %895 = vperm.xlu0 %894, %v729
        %v896 = vpop.permute.xlu0 %895
        %898 = vset.pattern.permute.xlu0 1
        %899 = vperm.xlu0 %898, %v730
        %v900 = vpop.permute.xlu0 %899
        %902 = vset.pattern.permute.xlu0 1
        %903 = vperm.xlu0 %902, %v731
        %v904 = vpop.permute.xlu0 %903
        %906 = vset.pattern.permute.xlu0 1
        %907 = vperm.xlu0 %906, %v732
        %v908 = vpop.permute.xlu0 %907
        %910 = vset.pattern.permute.xlu0 1
        %911 = vperm.xlu0 %910, %v733
        %v912 = vpop.permute.xlu0 %911
        %914 = vset.pattern.permute.xlu0 1
        %915 = vperm.xlu0 %914, %v734
        %v916 = vpop.permute.xlu0 %915
        %918 = vset.pattern.permute.xlu0 1
        %919 = vperm.xlu0 %918, %v735
        %v920 = vpop.permute.xlu0 %919
        %922 = vset.pattern.permute.xlu0 1
        %923 = vperm.xlu0 %922, %v736
        %v924 = vpop.permute.xlu0 %923
        %v926 = vlaneseq
        %v927 = vshrl.u32 %v926, 7
        %v928 = vsub.s32 0, %v927
        %v929 = vrot.slane %v861, %v928
        %v930 = vmul.f32 %v864, %v929
        %v931 = vmul.f32 %v868, %v929
        %v932 = vmul.f32 %v872, %v929
        %v933 = vmul.f32 %v876, %v929
        %v934 = vmul.f32 %v880, %v929
        %v935 = vmul.f32 %v884, %v929
        %v936 = vmul.f32 %v888, %v929
        %v937 = vmul.f32 %v892, %v929
        %v938 = vmul.f32 %v896, %v929
        %v939 = vmul.f32 %v900, %v929
        %v940 = vmul.f32 %v904, %v929
        %v941 = vmul.f32 %v908, %v929
        %v942 = vmul.f32 %v912, %v929
        %v943 = vmul.f32 %v916, %v929
        %v944 = vmul.f32 %v920, %v929
        %v945 = vmul.f32 %v924, %v929
        %v946 = vadd.f32 %v845, %v930
        %v947 = vadd.f32 %v846, %v931
        %v948 = vadd.f32 %v847, %v932
        %v949 = vadd.f32 %v848, %v933
        %v950 = vadd.f32 %v849, %v934
        %v951 = vadd.f32 %v850, %v935
        %v952 = vadd.f32 %v851, %v936
        %v953 = vadd.f32 %v852, %v937
        %v954 = vadd.f32 %v853, %v938
        %v955 = vadd.f32 %v854, %v939
        %v956 = vadd.f32 %v855, %v940
        %v957 = vadd.f32 %v856, %v941
        %v958 = vadd.f32 %v857, %v942
        %v959 = vadd.f32 %v858, %v943
        %v960 = vadd.f32 %v859, %v944
        %v961 = vadd.f32 %v860, %v945
        %v962 = vld [vmem:[%s4 + $0x2] sm:$0x1]
        %963 = vset.pattern.permute.xlu0 2
        %964 = vperm.xlu0 %963, %v721
        %v965 = vpop.permute.xlu0 %964
        %967 = vset.pattern.permute.xlu0 2
        %968 = vperm.xlu0 %967, %v722
        %v969 = vpop.permute.xlu0 %968
        %971 = vset.pattern.permute.xlu0 2
        %972 = vperm.xlu0 %971, %v723
        %v973 = vpop.permute.xlu0 %972
        %975 = vset.pattern.permute.xlu0 2
        %976 = vperm.xlu0 %975, %v724
        %v977 = vpop.permute.xlu0 %976
        %979 = vset.pattern.permute.xlu0 2
        %980 = vperm.xlu0 %979, %v725
        %v981 = vpop.permute.xlu0 %980
        %983 = vset.pattern.permute.xlu0 2
        %984 = vperm.xlu0 %983, %v726
        %v985 = vpop.permute.xlu0 %984
        %987 = vset.pattern.permute.xlu0 2
        %988 = vperm.xlu0 %987, %v727
        %v989 = vpop.permute.xlu0 %988
        %991 = vset.pattern.permute.xlu0 2
        %992 = vperm.xlu0 %991, %v728
        %v993 = vpop.permute.xlu0 %992
        %995 = vset.pattern.permute.xlu0 2
        %996 = vperm.xlu0 %995, %v729
        %v997 = vpop.permute.xlu0 %996
        %999 = vset.pattern.permute.xlu0 2
        %1000 = vperm.xlu0 %999, %v730
        %v1001 = vpop.permute.xlu0 %1000
        %1003 = vset.pattern.permute.xlu0 2
        %1004 = vperm.xlu0 %1003, %v731
        %v1005 = vpop.permute.xlu0 %1004
        %1007 = vset.pattern.permute.xlu0 2
        %1008 = vperm.xlu0 %1007, %v732
        %v1009 = vpop.permute.xlu0 %1008
        %1011 = vset.pattern.permute.xlu0 2
        %1012 = vperm.xlu0 %1011, %v733
        %v1013 = vpop.permute.xlu0 %1012
        %1015 = vset.pattern.permute.xlu0 2
        %1016 = vperm.xlu0 %1015, %v734
        %v1017 = vpop.permute.xlu0 %1016
        %1019 = vset.pattern.permute.xlu0 2
        %1020 = vperm.xlu0 %1019, %v735
        %v1021 = vpop.permute.xlu0 %1020
        %1023 = vset.pattern.permute.xlu0 2
        %1024 = vperm.xlu0 %1023, %v736
        %v1025 = vpop.permute.xlu0 %1024
        %v1027 = vlaneseq
        %v1028 = vshrl.u32 %v1027, 7
        %v1029 = vsub.s32 0, %v1028
        %v1030 = vrot.slane %v962, %v1029
        %v1031 = vmul.f32 %v965, %v1030
        %v1032 = vmul.f32 %v969, %v1030
        %v1033 = vmul.f32 %v973, %v1030
        %v1034 = vmul.f32 %v977, %v1030
        %v1035 = vmul.f32 %v981, %v1030
        %v1036 = vmul.f32 %v985, %v1030
        %v1037 = vmul.f32 %v989, %v1030
        %v1038 = vmul.f32 %v993, %v1030
        %v1039 = vmul.f32 %v997, %v1030
        %v1040 = vmul.f32 %v1001, %v1030
        %v1041 = vmul.f32 %v1005, %v1030
        %v1042 = vmul.f32 %v1009, %v1030
        %v1043 = vmul.f32 %v1013, %v1030
        %v1044 = vmul.f32 %v1017, %v1030
        %v1045 = vmul.f32 %v1021, %v1030
        %v1046 = vmul.f32 %v1025, %v1030
        %v1047 = vadd.f32 %v946, %v1031
        %v1048 = vadd.f32 %v947, %v1032
        %v1049 = vadd.f32 %v948, %v1033
        %v1050 = vadd.f32 %v949, %v1034
        %v1051 = vadd.f32 %v950, %v1035
        %v1052 = vadd.f32 %v951, %v1036
        %v1053 = vadd.f32 %v952, %v1037
        %v1054 = vadd.f32 %v953, %v1038
        %v1055 = vadd.f32 %v954, %v1039
        %v1056 = vadd.f32 %v955, %v1040
        %v1057 = vadd.f32 %v956, %v1041
        %v1058 = vadd.f32 %v957, %v1042
        %v1059 = vadd.f32 %v958, %v1043
        %v1060 = vadd.f32 %v959, %v1044
        %v1061 = vadd.f32 %v960, %v1045
        %v1062 = vadd.f32 %v961, %v1046
        %v1063 = vmax.f32 %v1047, 0.0
        %v1064 = vmax.f32 %v1048, 0.0
        %v1065 = vmax.f32 %v1049, 0.0
        %v1066 = vmax.f32 %v1050, 0.0
        %v1067 = vmax.f32 %v1051, 0.0
        %v1068 = vmax.f32 %v1052, 0.0
        %v1069 = vmax.f32 %v1053, 0.0
        %v1070 = vmax.f32 %v1054, 0.0
        %v1071 = vmax.f32 %v1055, 0.0
        %v1072 = vmax.f32 %v1056, 0.0
        %v1073 = vmax.f32 %v1057, 0.0
        %v1074 = vmax.f32 %v1058, 0.0
        %v1075 = vmax.f32 %v1059, 0.0
        %v1076 = vmax.f32 %v1060, 0.0
        %v1077 = vmax.f32 %v1061, 0.0
        %v1078 = vmax.f32 %v1062, 0.0
        %v1079 = vld [vmem:[%s6] sm:$0xff]
        %v1080 = vld [vmem:[%s6 + $0x8] sm:$0xff]
        %v1081 = vld [vmem:[%s7] sm:$0x1]
        %v1083 = vlaneseq
        %v1084 = vshrl.u32 %v1083, 7
        %v1085 = vsub.s32 0, %v1084
        %v1086 = vrot.slane %v1081, %v1085
        %vm1088 = vcmask 130048
        %v1090 = vsel %vm1088, %v1063, 0
        %v1093 = vsel %vm1088, %v1064, 0
        %v1096 = vsel %vm1088, %v1065, 0
        %v1099 = vsel %vm1088, %v1066, 0
        %v1102 = vsel %vm1088, %v1067, 0
        %v1105 = vsel %vm1088, %v1068, 0
        %v1108 = vsel %vm1088, %v1069, 0
        %v1111 = vsel %vm1088, %v1070, 0
        %v1114 = vsel %vm1088, %v1071, 0
        %v1117 = vsel %vm1088, %v1072, 0
        %v1120 = vsel %vm1088, %v1073, 0
        %v1123 = vsel %vm1088, %v1074, 0
        %v1126 = vsel %vm1088, %v1075, 0
        %v1129 = vsel %vm1088, %v1076, 0
        %v1132 = vsel %vm1088, %v1077, 0
        %v1135 = vsel %vm1088, %v1078, 0
        %1137 = vmatprep.subr.mxu0 0.0
        %1138 = vmatpush1.msra.mxu0 0.0
        %1139 = vmatprep.subr.mxu0 0.0
        %1140 = vmatpush1.msra.mxu0 0.0
        %1141 = vmatprep.subr.mxu0 0.0
        %1142 = vmatpush1.msra.mxu0 0.0
        %1143 = vmatprep.subr.mxu0 0.0
        %1144 = vmatpush1.msra.mxu0 0.0
        %1145 = vmatprep.subr.mxu0 0.0
        %1146 = vmatpush1.msra.mxu0 0.0
        %1147 = vmatprep.subr.mxu0 0.0
        %1148 = vmatpush1.msra.mxu0 0.0
        %1149 = vmatprep.subr.mxu0 0.0
        %1150 = vmatpush1.msra.mxu0 0.0
        %1151 = vmatprep.subr.mxu0 0.0
        %1152 = vmatpush1.msra.mxu0 0.0
        %1153 = vmatprep.subr.mxu0 0.0
        %1154 = vmatpush1.msra.mxu0 0.0
        %1155 = vmatprep.subr.mxu0 0.0
        %1156 = vmatpush1.msra.mxu0 0.0
        %1157 = vmatprep.subr.mxu0 0.0
        %1158 = vmatpush1.msra.mxu0 0.0
        %1159 = vmatprep.subr.mxu0 0.0
        %1160 = vmatpush1.msra.mxu0 0.0
        %1161 = vmatprep.subr.mxu0 0.0
        %1162 = vmatpush1.msra.mxu0 0.0
        %1163 = vmatprep.subr.mxu0 0.0
        %1164 = vmatpush1.msra.mxu0 0.0
        %1165 = vmatprep.subr.mxu0 0.0
        %1166 = vmatpush1.msra.mxu0 %v1080
        %1167 = vmatprep.subr.mxu0 0.0
        %1168 = vmatpush1.msra.mxu0 %v1079
        %1169 = vmatprep.subr.mxu0 0.0
        %1170 = vmatpush2.msra.mxu0 0.0
        %1171 = vmatprep.subr.mxu0 0.0
        %1172 = vmatpush2.msra.mxu0 0.0
        %1173 = vmatprep.subr.mxu0 0.0
        %1174 = vmatpush2.msra.mxu0 0.0
        %1175 = vmatprep.subr.mxu0 0.0
        %1176 = vmatpush2.msra.mxu0 0.0
        %1177 = vmatprep.subr.mxu0 0.0
        %1178 = vmatpush2.msra.mxu0 0.0
        %1179 = vmatprep.subr.mxu0 0.0
        %1180 = vmatpush2.msra.mxu0 0.0
        %1181 = vmatprep.subr.mxu0 0.0
        %1182 = vmatpush2.msra.mxu0 0.0
        %1183 = vmatprep.subr.mxu0 0.0
        %1184 = vmatpush2.msra.mxu0 0.0
        %1185 = vmatprep.subr.mxu0 0.0
        %1186 = vmatpush2.msra.mxu0 0.0
        %1187 = vmatprep.subr.mxu0 0.0
        %1188 = vmatpush2.msra.mxu0 0.0
        %1189 = vmatprep.subr.mxu0 0.0
        %1190 = vmatpush2.msra.mxu0 0.0
        %1191 = vmatprep.subr.mxu0 0.0
        %1192 = vmatpush2.msra.mxu0 0.0
        %1193 = vmatprep.subr.mxu0 0.0
        %1194 = vmatpush2.msra.mxu0 0.0
        %1195 = vmatprep.subr.mxu0 0.0
        %1196 = vmatpush2.msra.mxu0 0.0
        %1197 = vmatprep.subr.mxu0 0.0
        %1198 = vmatpush2.msra.mxu0 0.0
        %1199 = vmatprep.subr.mxu0 0.0
        %1200 = vmatpush2.msra.mxu0 0.0
        %1201 = vmatprep.mubr.f32.mxu0 0.0
        %1202 = vmatmul.mubr.f32.gmra.mxu0 %v1090
        %v1203 = vpop.f32.mrf.mxu0
        %v1204 = vadd.f32 %v1086, %v1203
        %v1205 = vpop.f32.mrf.mxu0
        %1206 = vmatprep.mubr.f32.mxu0 0.0
        %1207 = vmatmul.mubr.f32.gmra.mxu0 %v1093
        %v1208 = vpop.f32.mrf.mxu0
        %v1209 = vadd.f32 %v1086, %v1208
        %v1210 = vpop.f32.mrf.mxu0
        %1211 = vmatprep.mubr.f32.mxu0 0.0
        %1212 = vmatmul.mubr.f32.gmra.mxu0 %v1096
        %v1213 = vpop.f32.mrf.mxu0
        %v1214 = vadd.f32 %v1086, %v1213
        %v1215 = vpop.f32.mrf.mxu0
        %1216 = vmatprep.mubr.f32.mxu0 0.0
        %1217 = vmatmul.mubr.f32.gmra.mxu0 %v1099
        %v1218 = vpop.f32.mrf.mxu0
        %v1219 = vadd.f32 %v1086, %v1218
        %v1220 = vpop.f32.mrf.mxu0
        %1221 = vmatprep.mubr.f32.mxu0 0.0
        %1222 = vmatmul.mubr.f32.gmra.mxu0 %v1102
        %v1223 = vpop.f32.mrf.mxu0
        %v1224 = vadd.f32 %v1086, %v1223
        %v1225 = vpop.f32.mrf.mxu0
        %1226 = vmatprep.mubr.f32.mxu0 0.0
        %1227 = vmatmul.mubr.f32.gmra.mxu0 %v1105
        %v1228 = vpop.f32.mrf.mxu0
        %v1229 = vadd.f32 %v1086, %v1228
        %v1230 = vpop.f32.mrf.mxu0
        %1231 = vmatprep.mubr.f32.mxu0 0.0
        %1232 = vmatmul.mubr.f32.gmra.mxu0 %v1108
        %v1233 = vpop.f32.mrf.mxu0
        %v1234 = vadd.f32 %v1086, %v1233
        %v1235 = vpop.f32.mrf.mxu0
        %1236 = vmatprep.mubr.f32.mxu0 0.0
        %1237 = vmatmul.mubr.f32.gmra.mxu0 %v1111
        %v1238 = vpop.f32.mrf.mxu0
        %v1239 = vadd.f32 %v1086, %v1238
        %v1240 = vpop.f32.mrf.mxu0
        %1241 = vmatprep.mubr.f32.mxu0 0.0
        %1242 = vmatmul.mubr.f32.gmra.mxu0 %v1114
        %v1243 = vpop.f32.mrf.mxu0
        %v1244 = vadd.f32 %v1086, %v1243
        %v1245 = vpop.f32.mrf.mxu0
        %1246 = vmatprep.mubr.f32.mxu0 0.0
        %1247 = vmatmul.mubr.f32.gmra.mxu0 %v1117
        %v1248 = vpop.f32.mrf.mxu0
        %v1249 = vadd.f32 %v1086, %v1248
        %v1250 = vpop.f32.mrf.mxu0
        %1251 = vmatprep.mubr.f32.mxu0 0.0
        %1252 = vmatmul.mubr.f32.gmra.mxu0 %v1120
        %v1253 = vpop.f32.mrf.mxu0
        %v1254 = vadd.f32 %v1086, %v1253
        %v1255 = vpop.f32.mrf.mxu0
        %1256 = vmatprep.mubr.f32.mxu0 0.0
        %1257 = vmatmul.mubr.f32.gmra.mxu0 %v1123
        %v1258 = vpop.f32.mrf.mxu0
        %v1259 = vadd.f32 %v1086, %v1258
        %v1260 = vpop.f32.mrf.mxu0
        %1261 = vmatprep.mubr.f32.mxu0 0.0
        %1262 = vmatmul.mubr.f32.gmra.mxu0 %v1126
        %v1263 = vpop.f32.mrf.mxu0
        %v1264 = vadd.f32 %v1086, %v1263
        %v1265 = vpop.f32.mrf.mxu0
        %1266 = vmatprep.mubr.f32.mxu0 0.0
        %1267 = vmatmul.mubr.f32.gmra.mxu0 %v1129
        %v1268 = vpop.f32.mrf.mxu0
        %v1269 = vadd.f32 %v1086, %v1268
        %v1270 = vpop.f32.mrf.mxu0
        %1271 = vmatprep.mubr.f32.mxu0 0.0
        %1272 = vmatmul.mubr.f32.gmra.mxu0 %v1132
        %v1273 = vpop.f32.mrf.mxu0
        %v1274 = vadd.f32 %v1086, %v1273
        %v1275 = vpop.f32.mrf.mxu0
        %1276 = vmatprep.mubr.f32.mxu0 0.0
        %1277 = vmatmul.mubr.f32.gmra.mxu0 %v1135
        %v1278 = vpop.f32.mrf.mxu0
        %v1279 = vadd.f32 %v1086, %v1278
        %v1280 = vpop.f32.mrf.mxu0
        %1281 = vdwg.mxu0
        %v1282 = vmax.f32 %v1204, 0.0
        %v1283 = vmax.f32 %v1209, 0.0
        %v1284 = vmax.f32 %v1214, 0.0
        %v1285 = vmax.f32 %v1219, 0.0
        %v1286 = vmax.f32 %v1224, 0.0
        %v1287 = vmax.f32 %v1229, 0.0
        %v1288 = vmax.f32 %v1234, 0.0
        %v1289 = vmax.f32 %v1239, 0.0
        %v1290 = vmax.f32 %v1244, 0.0
        %v1291 = vmax.f32 %v1249, 0.0
        %v1292 = vmax.f32 %v1254, 0.0
        %v1293 = vmax.f32 %v1259, 0.0
        %v1294 = vmax.f32 %v1264, 0.0
        %v1295 = vmax.f32 %v1269, 0.0
        %v1296 = vmax.f32 %v1274, 0.0
        %v1297 = vmax.f32 %v1279, 0.0
        %v1298 = vld [vmem:[%s8] sm:$0xff]
        %v1299 = vld [vmem:[%s8 + $0x8] sm:$0xff]
        %v1300 = vld [vmem:[%s8 + $0x10] sm:$0xff]
        %v1301 = vld [vmem:[%s8 + $0x18] sm:$0xff]
        %v1302 = vld [vmem:[%s9] sm:$0x1]
        %v1304 = vlaneseq
        %v1305 = vshrl.u32 %v1304, 7
        %v1306 = vsub.s32 0, %v1305
        %v1307 = vrot.slane %v1302, %v1306
        %vm1309 = vcmask 261120
        %v1311 = vsel %vm1309, %v1282, 0
        %v1314 = vsel %vm1309, %v1283, 0
        %v1317 = vsel %vm1309, %v1284, 0
        %v1320 = vsel %vm1309, %v1285, 0
        %v1323 = vsel %vm1309, %v1286, 0
        %v1326 = vsel %vm1309, %v1287, 0
        %v1329 = vsel %vm1309, %v1288, 0
        %v1332 = vsel %vm1309, %v1289, 0
        %v1335 = vsel %vm1309, %v1290, 0
        %v1338 = vsel %vm1309, %v1291, 0
        %v1341 = vsel %vm1309, %v1292, 0
        %v1344 = vsel %vm1309, %v1293, 0
        %v1347 = vsel %vm1309, %v1294, 0
        %v1350 = vsel %vm1309, %v1295, 0
        %v1353 = vsel %vm1309, %v1296, 0
        %v1356 = vsel %vm1309, %v1297, 0
        %1358 = vmatprep.subr.mxu0 0.0
        %1359 = vmatpush1.msra.mxu0 0.0
        %1360 = vmatprep.subr.mxu0 0.0
        %1361 = vmatpush1.msra.mxu0 0.0
        %1362 = vmatprep.subr.mxu0 0.0
        %1363 = vmatpush1.msra.mxu0 0.0
        %1364 = vmatprep.subr.mxu0 0.0
        %1365 = vmatpush1.msra.mxu0 0.0
        %1366 = vmatprep.subr.mxu0 0.0
        %1367 = vmatpush1.msra.mxu0 0.0
        %1368 = vmatprep.subr.mxu0 0.0
        %1369 = vmatpush1.msra.mxu0 0.0
        %1370 = vmatprep.subr.mxu0 0.0
        %1371 = vmatpush1.msra.mxu0 0.0
        %1372 = vmatprep.subr.mxu0 0.0
        %1373 = vmatpush1.msra.mxu0 0.0
        %1374 = vmatprep.subr.mxu0 0.0
        %1375 = vmatpush1.msra.mxu0 0.0
        %1376 = vmatprep.subr.mxu0 0.0
        %1377 = vmatpush1.msra.mxu0 0.0
        %1378 = vmatprep.subr.mxu0 0.0
        %1379 = vmatpush1.msra.mxu0 0.0
        %1380 = vmatprep.subr.mxu0 0.0
        %1381 = vmatpush1.msra.mxu0 0.0
        %1382 = vmatprep.subr.mxu0 0.0
        %1383 = vmatpush1.msra.mxu0 %v1301
        %1384 = vmatprep.subr.mxu0 0.0
        %1385 = vmatpush1.msra.mxu0 %v1300
        %1386 = vmatprep.subr.mxu0 0.0
        %1387 = vmatpush1.msra.mxu0 %v1299
        %1388 = vmatprep.subr.mxu0 0.0
        %1389 = vmatpush1.msra.mxu0 %v1298
        %1390 = vmatprep.subr.mxu0 0.0
        %1391 = vmatpush2.msra.mxu0 0.0
        %1392 = vmatprep.subr.mxu0 0.0
        %1393 = vmatpush2.msra.mxu0 0.0
        %1394 = vmatprep.subr.mxu0 0.0
        %1395 = vmatpush2.msra.mxu0 0.0
        %1396 = vmatprep.subr.mxu0 0.0
        %1397 = vmatpush2.msra.mxu0 0.0
        %1398 = vmatprep.subr.mxu0 0.0
        %1399 = vmatpush2.msra.mxu0 0.0
        %1400 = vmatprep.subr.mxu0 0.0
        %1401 = vmatpush2.msra.mxu0 0.0
        %1402 = vmatprep.subr.mxu0 0.0
        %1403 = vmatpush2.msra.mxu0 0.0
        %1404 = vmatprep.subr.mxu0 0.0
        %1405 = vmatpush2.msra.mxu0 0.0
        %1406 = vmatprep.subr.mxu0 0.0
        %1407 = vmatpush2.msra.mxu0 0.0
        %1408 = vmatprep.subr.mxu0 0.0
        %1409 = vmatpush2.msra.mxu0 0.0
        %1410 = vmatprep.subr.mxu0 0.0
        %1411 = vmatpush2.msra.mxu0 0.0
        %1412 = vmatprep.subr.mxu0 0.0
        %1413 = vmatpush2.msra.mxu0 0.0
        %1414 = vmatprep.subr.mxu0 0.0
        %1415 = vmatpush2.msra.mxu0 0.0
        %1416 = vmatprep.subr.mxu0 0.0
        %1417 = vmatpush2.msra.mxu0 0.0
        %1418 = vmatprep.subr.mxu0 0.0
        %1419 = vmatpush2.msra.mxu0 0.0
        %1420 = vmatprep.subr.mxu0 0.0
        %1421 = vmatpush2.msra.mxu0 0.0
        %1422 = vmatprep.mubr.f32.mxu0 0.0
        %1423 = vmatmul.mubr.f32.gmra.mxu0 %v1311
        %v1424 = vpop.f32.mrf.mxu0
        %v1425 = vadd.f32 %v1307, %v1424
        %v1426 = vpop.f32.mrf.mxu0
        %1427 = vmatprep.mubr.f32.mxu0 0.0
        %1428 = vmatmul.mubr.f32.gmra.mxu0 %v1314
        %v1429 = vpop.f32.mrf.mxu0
        %v1430 = vadd.f32 %v1307, %v1429
        %v1431 = vpop.f32.mrf.mxu0
        %1432 = vmatprep.mubr.f32.mxu0 0.0
        %1433 = vmatmul.mubr.f32.gmra.mxu0 %v1317
        %v1434 = vpop.f32.mrf.mxu0
        %v1435 = vadd.f32 %v1307, %v1434
        %v1436 = vpop.f32.mrf.mxu0
        %1437 = vmatprep.mubr.f32.mxu0 0.0
        %1438 = vmatmul.mubr.f32.gmra.mxu0 %v1320
        %v1439 = vpop.f32.mrf.mxu0
        %v1440 = vadd.f32 %v1307, %v1439
        %v1441 = vpop.f32.mrf.mxu0
        %1442 = vmatprep.mubr.f32.mxu0 0.0
        %1443 = vmatmul.mubr.f32.gmra.mxu0 %v1323
        %v1444 = vpop.f32.mrf.mxu0
        %v1445 = vadd.f32 %v1307, %v1444
        %v1446 = vpop.f32.mrf.mxu0
        %1447 = vmatprep.mubr.f32.mxu0 0.0
        %1448 = vmatmul.mubr.f32.gmra.mxu0 %v1326
        %v1449 = vpop.f32.mrf.mxu0
        %v1450 = vadd.f32 %v1307, %v1449
        %v1451 = vpop.f32.mrf.mxu0
        %1452 = vmatprep.mubr.f32.mxu0 0.0
        %1453 = vmatmul.mubr.f32.gmra.mxu0 %v1329
        %v1454 = vpop.f32.mrf.mxu0
        %v1455 = vadd.f32 %v1307, %v1454
        %v1456 = vpop.f32.mrf.mxu0
        %1457 = vmatprep.mubr.f32.mxu0 0.0
        %1458 = vmatmul.mubr.f32.gmra.mxu0 %v1332
        %v1459 = vpop.f32.mrf.mxu0
        %v1460 = vadd.f32 %v1307, %v1459
        %v1461 = vpop.f32.mrf.mxu0
        %1462 = vmatprep.mubr.f32.mxu0 0.0
        %1463 = vmatmul.mubr.f32.gmra.mxu0 %v1335
        %v1464 = vpop.f32.mrf.mxu0
        %v1465 = vadd.f32 %v1307, %v1464
        %v1466 = vpop.f32.mrf.mxu0
        %1467 = vmatprep.mubr.f32.mxu0 0.0
        %1468 = vmatmul.mubr.f32.gmra.mxu0 %v1338
        %v1469 = vpop.f32.mrf.mxu0
        %v1470 = vadd.f32 %v1307, %v1469
        %v1471 = vpop.f32.mrf.mxu0
        %1472 = vmatprep.mubr.f32.mxu0 0.0
        %1473 = vmatmul.mubr.f32.gmra.mxu0 %v1341
        %v1474 = vpop.f32.mrf.mxu0
        %v1475 = vadd.f32 %v1307, %v1474
        %v1476 = vpop.f32.mrf.mxu0
        %1477 = vmatprep.mubr.f32.mxu0 0.0
        %1478 = vmatmul.mubr.f32.gmra.mxu0 %v1344
        %v1479 = vpop.f32.mrf.mxu0
        %v1480 = vadd.f32 %v1307, %v1479
        %v1481 = vpop.f32.mrf.mxu0
        %1482 = vmatprep.mubr.f32.mxu0 0.0
        %1483 = vmatmul.mubr.f32.gmra.mxu0 %v1347
        %v1484 = vpop.f32.mrf.mxu0
        %v1485 = vadd.f32 %v1307, %v1484
        %v1486 = vpop.f32.mrf.mxu0
        %1487 = vmatprep.mubr.f32.mxu0 0.0
        %1488 = vmatmul.mubr.f32.gmra.mxu0 %v1350
        %v1489 = vpop.f32.mrf.mxu0
        %v1490 = vadd.f32 %v1307, %v1489
        %v1491 = vpop.f32.mrf.mxu0
        %1492 = vmatprep.mubr.f32.mxu0 0.0
        %1493 = vmatmul.mubr.f32.gmra.mxu0 %v1353
        %v1494 = vpop.f32.mrf.mxu0
        %v1495 = vadd.f32 %v1307, %v1494
        %v1496 = vpop.f32.mrf.mxu0
        %1497 = vmatprep.mubr.f32.mxu0 0.0
        %1498 = vmatmul.mubr.f32.gmra.mxu0 %v1356
        %v1499 = vpop.f32.mrf.mxu0
        %v1500 = vadd.f32 %v1307, %v1499
        %v1501 = vpop.f32.mrf.mxu0
        %1502 = vdwg.mxu0
        %v1503 = vld [vmem:[%s2] sm:$0xf]
        %vm1504 = vcmask 31744
        %v1506 = vsel %vm1504, %v424, 0
        %v1509 = vsel %vm1504, %v425, 0
        %v1512 = vsel %vm1504, %v426, 0
        %v1515 = vsel %vm1504, %v427, 0
        %v1518 = vsel %vm1504, %v428, 0
        %v1521 = vsel %vm1504, %v429, 0
        %v1524 = vsel %vm1504, %v430, 0
        %v1527 = vsel %vm1504, %v431, 0
        %v1530 = vsel %vm1504, %v432, 0
        %v1533 = vsel %vm1504, %v433, 0
        %v1536 = vsel %vm1504, %v434, 0
        %v1539 = vsel %vm1504, %v435, 0
        %v1542 = vsel %vm1504, %v436, 0
        %v1545 = vsel %vm1504, %v437, 0
        %v1548 = vsel %vm1504, %v438, 0
        %v1551 = vsel %vm1504, %v439, 0
        %vm1553 = vcmask 1043456
        %v1555 = vsel %vm1553, %v1503, 0
        %1557 = vmatprep.subr.mxu0 0.0
        %1558 = vmatpush1.msra.mxu0 0.0
        %1559 = vmatprep.subr.mxu0 0.0
        %1560 = vmatpush1.msra.mxu0 0.0
        %1561 = vmatprep.subr.mxu0 0.0
        %1562 = vmatpush1.msra.mxu0 0.0
        %1563 = vmatprep.subr.mxu0 0.0
        %1564 = vmatpush1.msra.mxu0 0.0
        %1565 = vmatprep.subr.mxu0 0.0
        %1566 = vmatpush1.msra.mxu0 0.0
        %1567 = vmatprep.subr.mxu0 0.0
        %1568 = vmatpush1.msra.mxu0 0.0
        %1569 = vmatprep.subr.mxu0 0.0
        %1570 = vmatpush1.msra.mxu0 0.0
        %1571 = vmatprep.subr.mxu0 0.0
        %1572 = vmatpush1.msra.mxu0 0.0
        %1573 = vmatprep.subr.mxu0 0.0
        %1574 = vmatpush1.msra.mxu0 0.0
        %1575 = vmatprep.subr.mxu0 0.0
        %1576 = vmatpush1.msra.mxu0 0.0
        %1577 = vmatprep.subr.mxu0 0.0
        %1578 = vmatpush1.msra.mxu0 0.0
        %1579 = vmatprep.subr.mxu0 0.0
        %1580 = vmatpush1.msra.mxu0 0.0
        %1581 = vmatprep.subr.mxu0 0.0
        %1582 = vmatpush1.msra.mxu0 0.0
        %1583 = vmatprep.subr.mxu0 0.0
        %1584 = vmatpush1.msra.mxu0 0.0
        %1585 = vmatprep.subr.mxu0 0.0
        %1586 = vmatpush1.msra.mxu0 0.0
        %1587 = vmatprep.subr.mxu0 0.0
        %1588 = vmatpush1.msra.mxu0 %v1555
        %1589 = vmatprep.subr.mxu0 0.0
        %1590 = vmatpush2.msra.mxu0 0.0
        %1591 = vmatprep.subr.mxu0 0.0
        %1592 = vmatpush2.msra.mxu0 0.0
        %1593 = vmatprep.subr.mxu0 0.0
        %1594 = vmatpush2.msra.mxu0 0.0
        %1595 = vmatprep.subr.mxu0 0.0
        %1596 = vmatpush2.msra.mxu0 0.0
        %1597 = vmatprep.subr.mxu0 0.0
        %1598 = vmatpush2.msra.mxu0 0.0
        %1599 = vmatprep.subr.mxu0 0.0
        %1600 = vmatpush2.msra.mxu0 0.0
        %1601 = vmatprep.subr.mxu0 0.0
        %1602 = vmatpush2.msra.mxu0 0.0
        %1603 = vmatprep.subr.mxu0 0.0
        %1604 = vmatpush2.msra.mxu0 0.0
        %1605 = vmatprep.subr.mxu0 0.0
        %1606 = vmatpush2.msra.mxu0 0.0
        %1607 = vmatprep.subr.mxu0 0.0
        %1608 = vmatpush2.msra.mxu0 0.0
        %1609 = vmatprep.subr.mxu0 0.0
        %1610 = vmatpush2.msra.mxu0 0.0
        %1611 = vmatprep.subr.mxu0 0.0
        %1612 = vmatpush2.msra.mxu0 0.0
        %1613 = vmatprep.subr.mxu0 0.0
        %1614 = vmatpush2.msra.mxu0 0.0
        %1615 = vmatprep.subr.mxu0 0.0
        %1616 = vmatpush2.msra.mxu0 0.0
        %1617 = vmatprep.subr.mxu0 0.0
        %1618 = vmatpush2.msra.mxu0 0.0
        %1619 = vmatprep.subr.mxu0 0.0
        %1620 = vmatpush2.msra.mxu0 0.0
        %1621 = vmatprep.mubr.f32.mxu0 0.0
        %1622 = vmatmul.mubr.f32.gmra.mxu0 %v1506
        %v1623 = vpop.f32.mrf.mxu0
        %v1624 = vadd.f32 0.0, %v1623
        %v1625 = vpop.f32.mrf.mxu0
        %1626 = vmatprep.mubr.f32.mxu0 0.0
        %1627 = vmatmul.mubr.f32.gmra.mxu0 %v1509
        %v1628 = vpop.f32.mrf.mxu0
        %v1629 = vadd.f32 0.0, %v1628
        %v1630 = vpop.f32.mrf.mxu0
        %1631 = vmatprep.mubr.f32.mxu0 0.0
        %1632 = vmatmul.mubr.f32.gmra.mxu0 %v1512
        %v1633 = vpop.f32.mrf.mxu0
        %v1634 = vadd.f32 0.0, %v1633
        %v1635 = vpop.f32.mrf.mxu0
        %1636 = vmatprep.mubr.f32.mxu0 0.0
        %1637 = vmatmul.mubr.f32.gmra.mxu0 %v1515
        %v1638 = vpop.f32.mrf.mxu0
        %v1639 = vadd.f32 0.0, %v1638
        %v1640 = vpop.f32.mrf.mxu0
        %1641 = vmatprep.mubr.f32.mxu0 0.0
        %1642 = vmatmul.mubr.f32.gmra.mxu0 %v1518
        %v1643 = vpop.f32.mrf.mxu0
        %v1644 = vadd.f32 0.0, %v1643
        %v1645 = vpop.f32.mrf.mxu0
        %1646 = vmatprep.mubr.f32.mxu0 0.0
        %1647 = vmatmul.mubr.f32.gmra.mxu0 %v1521
        %v1648 = vpop.f32.mrf.mxu0
        %v1649 = vadd.f32 0.0, %v1648
        %v1650 = vpop.f32.mrf.mxu0
        %1651 = vmatprep.mubr.f32.mxu0 0.0
        %1652 = vmatmul.mubr.f32.gmra.mxu0 %v1524
        %v1653 = vpop.f32.mrf.mxu0
        %v1654 = vadd.f32 0.0, %v1653
        %v1655 = vpop.f32.mrf.mxu0
        %1656 = vmatprep.mubr.f32.mxu0 0.0
        %1657 = vmatmul.mubr.f32.gmra.mxu0 %v1527
        %v1658 = vpop.f32.mrf.mxu0
        %v1659 = vadd.f32 0.0, %v1658
        %v1660 = vpop.f32.mrf.mxu0
        %1661 = vmatprep.mubr.f32.mxu0 0.0
        %1662 = vmatmul.mubr.f32.gmra.mxu0 %v1530
        %v1663 = vpop.f32.mrf.mxu0
        %v1664 = vadd.f32 0.0, %v1663
        %v1665 = vpop.f32.mrf.mxu0
        %1666 = vmatprep.mubr.f32.mxu0 0.0
        %1667 = vmatmul.mubr.f32.gmra.mxu0 %v1533
        %v1668 = vpop.f32.mrf.mxu0
        %v1669 = vadd.f32 0.0, %v1668
        %v1670 = vpop.f32.mrf.mxu0
        %1671 = vmatprep.mubr.f32.mxu0 0.0
        %1672 = vmatmul.mubr.f32.gmra.mxu0 %v1536
        %v1673 = vpop.f32.mrf.mxu0
        %v1674 = vadd.f32 0.0, %v1673
        %v1675 = vpop.f32.mrf.mxu0
        %1676 = vmatprep.mubr.f32.mxu0 0.0
        %1677 = vmatmul.mubr.f32.gmra.mxu0 %v1539
        %v1678 = vpop.f32.mrf.mxu0
        %v1679 = vadd.f32 0.0, %v1678
        %v1680 = vpop.f32.mrf.mxu0
        %1681 = vmatprep.mubr.f32.mxu0 0.0
        %1682 = vmatmul.mubr.f32.gmra.mxu0 %v1542
        %v1683 = vpop.f32.mrf.mxu0
        %v1684 = vadd.f32 0.0, %v1683
        %v1685 = vpop.f32.mrf.mxu0
        %1686 = vmatprep.mubr.f32.mxu0 0.0
        %1687 = vmatmul.mubr.f32.gmra.mxu0 %v1545
        %v1688 = vpop.f32.mrf.mxu0
        %v1689 = vadd.f32 0.0, %v1688
        %v1690 = vpop.f32.mrf.mxu0
        %1691 = vmatprep.mubr.f32.mxu0 0.0
        %1692 = vmatmul.mubr.f32.gmra.mxu0 %v1548
        %v1693 = vpop.f32.mrf.mxu0
        %v1694 = vadd.f32 0.0, %v1693
        %v1695 = vpop.f32.mrf.mxu0
        %1696 = vmatprep.mubr.f32.mxu0 0.0
        %1697 = vmatmul.mubr.f32.gmra.mxu0 %v1551
        %v1698 = vpop.f32.mrf.mxu0
        %v1699 = vadd.f32 0.0, %v1698
        %v1700 = vpop.f32.mrf.mxu0
        %1701 = vdwg.mxu0
        %v1702 = vmul.f32 %v1624, %v1425
        %v1703 = vmul.f32 %v1629, %v1430
        %v1704 = vmul.f32 %v1634, %v1435
        %v1705 = vmul.f32 %v1639, %v1440
        %v1706 = vmul.f32 %v1644, %v1445
        %v1707 = vmul.f32 %v1649, %v1450
        %v1708 = vmul.f32 %v1654, %v1455
        %v1709 = vmul.f32 %v1659, %v1460
        %v1710 = vmul.f32 %v1664, %v1465
        %v1711 = vmul.f32 %v1669, %v1470
        %v1712 = vmul.f32 %v1674, %v1475
        %v1713 = vmul.f32 %v1679, %v1480
        %v1714 = vmul.f32 %v1684, %v1485
        %v1715 = vmul.f32 %v1689, %v1490
        %v1716 = vmul.f32 %v1694, %v1495
        %v1717 = vmul.f32 %v1699, %v1500
        %v1718 = vsel %vm626, %v1702, 0.0
        %v1719 = vrot.slane %v1718, 4
        %v1720 = vadd.f32 %v1718, %v1719
        %v1721 = vrot.slane %v1720, 2
        %v1722 = vadd.f32 %v1720, %v1721
        %v1723 = vrot.slane %v1722, 1
        %v1724 = vadd.f32 %v1722, %v1723
        %v1725 = vsel %vm626, %v1703, 0.0
        %v1726 = vrot.slane %v1725, 4
        %v1727 = vadd.f32 %v1725, %v1726
        %v1728 = vrot.slane %v1727, 2
        %v1729 = vadd.f32 %v1727, %v1728
        %v1730 = vrot.slane %v1729, 1
        %v1731 = vadd.f32 %v1729, %v1730
        %v1732 = vsel %vm626, %v1704, 0.0
        %v1733 = vrot.slane %v1732, 4
        %v1734 = vadd.f32 %v1732, %v1733
        %v1735 = vrot.slane %v1734, 2
        %v1736 = vadd.f32 %v1734, %v1735
        %v1737 = vrot.slane %v1736, 1
        %v1738 = vadd.f32 %v1736, %v1737
        %v1739 = vsel %vm626, %v1705, 0.0
        %v1740 = vrot.slane %v1739, 4
        %v1741 = vadd.f32 %v1739, %v1740
        %v1742 = vrot.slane %v1741, 2
        %v1743 = vadd.f32 %v1741, %v1742
        %v1744 = vrot.slane %v1743, 1
        %v1745 = vadd.f32 %v1743, %v1744
        %v1746 = vsel %vm626, %v1706, 0.0
        %v1747 = vrot.slane %v1746, 4
        %v1748 = vadd.f32 %v1746, %v1747
        %v1749 = vrot.slane %v1748, 2
        %v1750 = vadd.f32 %v1748, %v1749
        %v1751 = vrot.slane %v1750, 1
        %v1752 = vadd.f32 %v1750, %v1751
        %v1753 = vsel %vm626, %v1707, 0.0
        %v1754 = vrot.slane %v1753, 4
        %v1755 = vadd.f32 %v1753, %v1754
        %v1756 = vrot.slane %v1755, 2
        %v1757 = vadd.f32 %v1755, %v1756
        %v1758 = vrot.slane %v1757, 1
        %v1759 = vadd.f32 %v1757, %v1758
        %v1760 = vsel %vm626, %v1708, 0.0
        %v1761 = vrot.slane %v1760, 4
        %v1762 = vadd.f32 %v1760, %v1761
        %v1763 = vrot.slane %v1762, 2
        %v1764 = vadd.f32 %v1762, %v1763
        %v1765 = vrot.slane %v1764, 1
        %v1766 = vadd.f32 %v1764, %v1765
        %v1767 = vsel %vm626, %v1709, 0.0
        %v1768 = vrot.slane %v1767, 4
        %v1769 = vadd.f32 %v1767, %v1768
        %v1770 = vrot.slane %v1769, 2
        %v1771 = vadd.f32 %v1769, %v1770
        %v1772 = vrot.slane %v1771, 1
        %v1773 = vadd.f32 %v1771, %v1772
        %v1774 = vsel %vm626, %v1710, 0.0
        %v1775 = vrot.slane %v1774, 4
        %v1776 = vadd.f32 %v1774, %v1775
        %v1777 = vrot.slane %v1776, 2
        %v1778 = vadd.f32 %v1776, %v1777
        %v1779 = vrot.slane %v1778, 1
        %v1780 = vadd.f32 %v1778, %v1779
        %v1781 = vsel %vm626, %v1711, 0.0
        %v1782 = vrot.slane %v1781, 4
        %v1783 = vadd.f32 %v1781, %v1782
        %v1784 = vrot.slane %v1783, 2
        %v1785 = vadd.f32 %v1783, %v1784
        %v1786 = vrot.slane %v1785, 1
        %v1787 = vadd.f32 %v1785, %v1786
        %v1788 = vsel %vm626, %v1712, 0.0
        %v1789 = vrot.slane %v1788, 4
        %v1790 = vadd.f32 %v1788, %v1789
        %v1791 = vrot.slane %v1790, 2
        %v1792 = vadd.f32 %v1790, %v1791
        %v1793 = vrot.slane %v1792, 1
        %v1794 = vadd.f32 %v1792, %v1793
        %v1795 = vsel %vm626, %v1713, 0.0
        %v1796 = vrot.slane %v1795, 4
        %v1797 = vadd.f32 %v1795, %v1796
        %v1798 = vrot.slane %v1797, 2
        %v1799 = vadd.f32 %v1797, %v1798
        %v1800 = vrot.slane %v1799, 1
        %v1801 = vadd.f32 %v1799, %v1800
        %v1802 = vsel %vm626, %v1714, 0.0
        %v1803 = vrot.slane %v1802, 4
        %v1804 = vadd.f32 %v1802, %v1803
        %v1805 = vrot.slane %v1804, 2
        %v1806 = vadd.f32 %v1804, %v1805
        %v1807 = vrot.slane %v1806, 1
        %v1808 = vadd.f32 %v1806, %v1807
        %v1809 = vsel %vm626, %v1715, 0.0
        %v1810 = vrot.slane %v1809, 4
        %v1811 = vadd.f32 %v1809, %v1810
        %v1812 = vrot.slane %v1811, 2
        %v1813 = vadd.f32 %v1811, %v1812
        %v1814 = vrot.slane %v1813, 1
        %v1815 = vadd.f32 %v1813, %v1814
        %v1816 = vsel %vm626, %v1716, 0.0
        %v1817 = vrot.slane %v1816, 4
        %v1818 = vadd.f32 %v1816, %v1817
        %v1819 = vrot.slane %v1818, 2
        %v1820 = vadd.f32 %v1818, %v1819
        %v1821 = vrot.slane %v1820, 1
        %v1822 = vadd.f32 %v1820, %v1821
        %v1823 = vsel %vm626, %v1717, 0.0
        %v1824 = vrot.slane %v1823, 4
        %v1825 = vadd.f32 %v1823, %v1824
        %v1826 = vrot.slane %v1825, 2
        %v1827 = vadd.f32 %v1825, %v1826
        %v1828 = vrot.slane %v1827, 1
        %v1829 = vadd.f32 %v1827, %v1828
        %v1830 = vld [vmem:[%s3] sm:$0x1]
        %v1832 = vlaneseq
        %v1833 = vshrl.u32 %v1832, 7
        %v1834 = vsub.s32 0, %v1833
        %v1835 = vrot.slane %v1830, %v1834
        %v1837 = vadd.f32 %v1724, %v1835
        %v1838 = vadd.f32 %v1731, %v1835
        %v1839 = vadd.f32 %v1738, %v1835
        %v1840 = vadd.f32 %v1745, %v1835
        %v1841 = vadd.f32 %v1752, %v1835
        %v1842 = vadd.f32 %v1759, %v1835
        %v1843 = vadd.f32 %v1766, %v1835
        %v1844 = vadd.f32 %v1773, %v1835
        %v1845 = vadd.f32 %v1780, %v1835
        %v1846 = vadd.f32 %v1787, %v1835
        %v1847 = vadd.f32 %v1794, %v1835
        %v1848 = vadd.f32 %v1801, %v1835
        %v1849 = vadd.f32 %v1808, %v1835
        %v1850 = vadd.f32 %v1815, %v1835
        %v1851 = vadd.f32 %v1822, %v1835
        %v1852 = vadd.f32 %v1829, %v1835
        %v1869 = vrot.slane %v1838, 7
        %v1870 = vsel %vm603, %v1869, %v1837
        %v1871 = vrot.slane %v1839, 6
        %v1872 = vsel %vm605, %v1871, %v1870
        %v1873 = vrot.slane %v1840, 5
        %v1874 = vsel %vm607, %v1873, %v1872
        %v1875 = vrot.slane %v1841, 4
        %v1876 = vsel %vm609, %v1875, %v1874
        %v1877 = vrot.slane %v1842, 3
        %v1878 = vsel %vm611, %v1877, %v1876
        %v1879 = vrot.slane %v1843, 2
        %v1880 = vsel %vm613, %v1879, %v1878
        %v1881 = vrot.slane %v1844, 1
        %v1882 = vsel %vm615, %v1881, %v1880
        %v1883 = vrot.slane %v1846, 7
        %v1884 = vsel %vm603, %v1883, %v1845
        %v1885 = vrot.slane %v1847, 6
        %v1886 = vsel %vm605, %v1885, %v1884
        %v1887 = vrot.slane %v1848, 5
        %v1888 = vsel %vm607, %v1887, %v1886
        %v1889 = vrot.slane %v1849, 4
        %v1890 = vsel %vm609, %v1889, %v1888
        %v1891 = vrot.slane %v1850, 3
        %v1892 = vsel %vm611, %v1891, %v1890
        %v1893 = vrot.slane %v1851, 2
        %v1894 = vsel %vm613, %v1893, %v1892
        %v1895 = vrot.slane %v1852, 1
        %v1896 = vsel %vm615, %v1895, %v1894
        %1899 = vxpose.xlu0.b32.start [1/16] %v1882, 128
        %1900 = vxpose.xlu0.b32.cont [2/16] %v1896, 128
        %1901 = vxpose.xlu0.b32.cont [3/16] 0.0, 128
        %1902 = vxpose.xlu0.b32.cont [4/16] 0.0, 128
        %1903 = vxpose.xlu0.b32.cont [5/16] 0.0, 128
        %1904 = vxpose.xlu0.b32.cont [6/16] 0.0, 128
        %1905 = vxpose.xlu0.b32.cont [7/16] 0.0, 128
        %1906 = vxpose.xlu0.b32.cont [8/16] 0.0, 128
        %1907 = vxpose.xlu0.b32.cont [9/16] 0.0, 128
        %1908 = vxpose.xlu0.b32.cont [10/16] 0.0, 128
        %1909 = vxpose.xlu0.b32.cont [11/16] 0.0, 128
        %1910 = vxpose.xlu0.b32.cont [12/16] 0.0, 128
        %1911 = vxpose.xlu0.b32.cont [13/16] 0.0, 128
        %1912 = vxpose.xlu0.b32.cont [14/16] 0.0, 128
        %1913 = vxpose.xlu0.b32.cont [15/16] 0.0, 128
        %1914 = vxpose.xlu0.b32.end [16/16] 0.0, 128
        %v1915 = vpop.trf.xlu0
        %v1916 = vpop.trf.xlu0
        %v1917 = vpop.trf.xlu0
        %v1918 = vpop.trf.xlu0
        %v1919 = vpop.trf.xlu0
        %v1920 = vpop.trf.xlu0
        %v1921 = vpop.trf.xlu0
        %v1922 = vpop.trf.xlu0
        %v1923 = vpop.trf.xlu0
        %v1924 = vpop.trf.xlu0
        %v1925 = vpop.trf.xlu0
        %v1926 = vpop.trf.xlu0
        %v1927 = vpop.trf.xlu0
        %v1928 = vpop.trf.xlu0
        %v1929 = vpop.trf.xlu0
        %v1930 = vpop.trf.xlu0
        %1931 = vst.msk [vmem:[%s403] sm:$0xff] %vm1088, %v1915
        %s1932 = sand.u32 %s270, 1
        %s1933 = scalar_lea.sflag [#allocation3], %s1932
        %s1934 = sand.u32 %s270, 1
        %s1935 = smul.addr %s1934, 8
        %s1936 = scalar_lea.vmem [#allocation2], %s1935
        // Predicated region
        $region61: #{tpu_custom_call.1} parent=59 // pred_check
          %p1937 = pneg %p280
        $region62: #{tpu_custom_call.1} parent=59 // pred_check_branch
          %1939 = sbr.rel (%p1937) target = $region64
        $region63: #{tpu_custom_call.1} parent=59 // pred_region
          %s1941 = ssub.s32 128, 128
          %1942 = vsyncadd %s1933, %s1941
          %s1943 = sadd.s32 %s29, %s28
          %s1944 = smul.addr %s1943, 128
          %s1945 = scalar_lea.hbm %s10, %s1944
          %s1947 = sshll.u32 %s1936, 4
          %s1948 = int_to_ptr.vmem [resolvable:$true] %s1947
          %1950 = dma.vmem_to_hbm [thread:$0]  %s1948, 128, %s1945, %s1933
        $region64: #{tpu_custom_call.1} parent=59 // pred_fallthru
          _
      $region60: #{tpu_custom_call.1} parent=5 // pred_fallthru
        _
      %p1951 = scmp.le.s32.totalorder 2, %s19
      // Predicated region
      $region65: #{tpu_custom_call.1} parent=5 // pred_check
        %p1952 = pneg %p1951
      $region66: #{tpu_custom_call.1} parent=5 // pred_check_branch
        %1954 = sbr.rel (%p1952) target = $region68
      $region67: #{tpu_custom_call.1} parent=5 // pred_region
        %s1955 = ssub.s32 %s19, 2
        // Predicated region
        $region69: #{tpu_custom_call.1} parent=67 // pred_check
          %p1956 = pneg %p286
        $region70: #{tpu_custom_call.1} parent=67 // pred_check_branch
          %1958 = sbr.rel (%p1956) target = $region72
        $region71: #{tpu_custom_call.1} parent=67 // pred_region
          %s1959 = sand.u32 %s271, 1
          %s1960 = scalar_lea.sflag [#allocation3], %s1959
          %s1961 = sand.u32 %s271, 1
          %s1962 = smul.addr %s1961, 8
          %s1963 = scalar_lea.vmem [#allocation2], %s1962
          %1964 = dma.done %s1960, 128
        $region72: #{tpu_custom_call.1} parent=67 // pred_fallthru
          _
      $region68: #{tpu_custom_call.1} parent=5 // pred_fallthru
        _
    $region6: #{tpu_custom_call.1} parent=1 // loop_footer
      %s23 = sadd.s32 1, %s19
    $region7: #{tpu_custom_call.1} parent=1 // loop_footer_branch
      %18 = sbr.rel target = $region3
    $region8: #{tpu_custom_call.1} parent=1 // loop_exit
      _
    %1965 = vsyncpa [#allocation3], 1
    %s1966 = scalar_lea.sflag [#allocation3], 1
    %1967 = vsyncpa %s1966, 1

</llo_original>
